<compile_context>
chip_gen: v7x
topology: tpu7x:2x2x1
jax: 0.10.0
libtpu: 0.0.40
codegen_flags: <defaults>
</compile_context>

<pallas_src>
import functools

import jax
import jax.numpy as jnp
from jax.experimental import pallas as pl
from jax.experimental.pallas import tpu as pltpu

# Explicit scoped-VMEM budget: safe on v5e/v6e (128 MiB phys) and v7x (64 MiB).
_VMEM_LIMIT = 32 * 1024 * 1024


def _round_up(x, m):
    return (x + m - 1) // m * m


# ----------------------------- Pallas kernels ------------------------------

def _conv_bn_kernel(x_ref, w_ref, s_ref, b_ref, o_ref, acc_ref, *, relu):
    """(TM,TK)@(TK,N) accumulated over the K grid axis, fused BN affine (+ReLU)."""
    k = pl.program_id(1)

    @pl.when(k == 0)
    def _():
        acc_ref[...] = jnp.zeros_like(acc_ref)

    acc_ref[...] += jnp.dot(x_ref[...], w_ref[...],
                            preferred_element_type=jnp.float32)

    @pl.when(k == pl.num_programs(1) - 1)
    def _():
        out = acc_ref[...] * s_ref[...] + b_ref[...]
        if relu:
            out = jnp.maximum(out, 0.0)
        o_ref[...] = out.astype(o_ref.dtype)


def _conv_bn_kernel_single(x_ref, w_ref, s_ref, b_ref, o_ref, *, relu):
    """Single-K-step variant: no accumulator scratch, direct compute + store."""
    acc = jnp.dot(x_ref[...], w_ref[...], preferred_element_type=jnp.float32)
    out = acc * s_ref[...] + b_ref[...]
    if relu:
        out = jnp.maximum(out, 0.0)
    o_ref[...] = out.astype(o_ref.dtype)


def _conv_bn_res_kernel(x_ref, w_ref, s_ref, b_ref,
                        xs_ref, ws_ref, ss_ref, bs_ref,
                        o_ref, acc_ref, *, relu):
    """Main conv matmul + BN fused with the 1x1 shortcut conv + BN, then ReLU.

    The shortcut matmul runs once per M tile (on the last K step), so the
    (M,N) shortcut tensor never round-trips through HBM."""
    k = pl.program_id(1)

    @pl.when(k == 0)
    def _():
        acc_ref[...] = jnp.zeros_like(acc_ref)

    acc_ref[...] += jnp.dot(x_ref[...], w_ref[...],
                            preferred_element_type=jnp.float32)

    @pl.when(k == pl.num_programs(1) - 1)
    def _():
        sc = jnp.dot(xs_ref[...], ws_ref[...],
                     preferred_element_type=jnp.float32)
        out = (acc_ref[...] * s_ref[...] + b_ref[...]
               + sc * ss_ref[...] + bs_ref[...])
        if relu:
            out = jnp.maximum(out, 0.0)
        o_ref[...] = out.astype(o_ref.dtype)


def _conv_bn_res_kernel_single(x_ref, w_ref, s_ref, b_ref,
                               xs_ref, ws_ref, ss_ref, bs_ref,
                               o_ref, *, relu):
    """Single-K-step residual-fused variant: no accumulator scratch."""
    acc = jnp.dot(x_ref[...], w_ref[...], preferred_element_type=jnp.float32)
    sc = jnp.dot(xs_ref[...], ws_ref[...], preferred_element_type=jnp.float32)
    out = (acc * s_ref[...] + b_ref[...] + sc * ss_ref[...] + bs_ref[...])
    if relu:
        out = jnp.maximum(out, 0.0)
    o_ref[...] = out.astype(o_ref.dtype)


def _fc_head_kernel(x_ref, w_ref, b_ref, o_ref):
    # BN1d already folded into (w, b) offline; the F->1 projection is a VPU
    # multiply + lane reduction (avoids the worst-case N=1 MXU shape).
    y = jnp.sum(x_ref[...] * w_ref[...], axis=-1, keepdims=True) + b_ref[...]
    o_ref[...] = jax.nn.sigmoid(y).astype(o_ref.dtype)


# ----------------------------- Pallas wrappers ------------------------------

def fused_conv_bn(x, w, scale, shift, *, relu, shortcut=None,
                  out_dtype=jnp.float32):
    """x:(M,K) @ w:(K,Cout) with fused BN affine (+ fused 1x1 shortcut conv+BN)
    (+ReLU).  Tiled over (M, K); bf16 MXU inputs, f32 accumulation; output
    channels zero-padded to a lane-dense multiple of 128 and sliced on return."""
    M, K = x.shape
    Cout = w.shape[1]
    N = _round_up(Cout, 128)                       # lane-dense output/stores

    # K tiling (pad K with zeros so the K grid divides evenly).
    TK = 512 if K > 512 else _round_up(K, 128)
    Kp = _round_up(K, TK)
    nk = Kp // TK
    # M tiling (multiple of 16 so bf16 sublane packing is happy).
    TM = min(512, _round_up(M, 16))
    Mp = _round_up(M, TM)
    nm = Mp // TM

    xb = jnp.pad(x.astype(jnp.bfloat16), ((0, Mp - M), (0, Kp - K)))
    wb = jnp.pad(w.astype(jnp.bfloat16), ((0, Kp - K), (0, N - Cout)))
    s2 = jnp.pad(scale.astype(jnp.float32).reshape(1, Cout),
                 ((0, 0), (0, N - Cout)))
    b2 = jnp.pad(shift.astype(jnp.float32).reshape(1, Cout),
                 ((0, 0), (0, N - Cout)))

    x_spec = pl.BlockSpec((TM, TK), lambda i, k: (i, k))
    w_spec = pl.BlockSpec((TK, N), lambda i, k: (k, 0))
    vec_spec = pl.BlockSpec((1, N), lambda i, k: (0, 0))
    o_spec = pl.BlockSpec((TM, N), lambda i, k: (i, 0))

    cparams = pltpu.CompilerParams(
        dimension_semantics=("parallel", "arbitrary"),
        vmem_limit_bytes=_VMEM_LIMIT)

    flops = 2 * Mp * Kp * N
    bytes_accessed = (xb.size * 2 + wb.size * 2
                      + Mp * N * jnp.dtype(out_dtype).itemsize + 4 * N * 4)

    if shortcut is None:
        operands = (xb, wb, s2, b2)
        in_specs = [x_spec, w_spec, vec_spec, vec_spec]
        if nk == 1:
            kern = functools.partial(_conv_bn_kernel_single, relu=relu)
            scratch = []
        else:
            kern = functools.partial(_conv_bn_kernel, relu=relu)
            scratch = [pltpu.VMEM((TM, N), jnp.float32)]
    else:
        xs, ws, ss, bs = shortcut
        Ks = xs.shape[1]
        Ksp = _round_up(Ks, 128)                   # lane-dense shortcut operand
        xsb = jnp.pad(xs.astype(jnp.bfloat16), ((0, Mp - M), (0, Ksp - Ks)))
        wsb = jnp.pad(ws.astype(jnp.bfloat16), ((0, Ksp - Ks), (0, N - Cout)))
        ss2 = jnp.pad(ss.astype(jnp.float32).reshape(1, Cout),
                      ((0, 0), (0, N - Cout)))
        bs2 = jnp.pad(bs.astype(jnp.float32).reshape(1, Cout),
                      ((0, 0), (0, N - Cout)))
        operands = (xb, wb, s2, b2, xsb, wsb, ss2, bs2)
        in_specs = [x_spec, w_spec, vec_spec, vec_spec,
                    pl.BlockSpec((TM, Ksp), lambda i, k: (i, 0)),
                    pl.BlockSpec((Ksp, N), lambda i, k: (0, 0)),
                    vec_spec, vec_spec]
        flops += 2 * Mp * Ksp * N
        bytes_accessed += xsb.size * 2 + wsb.size * 2 + 2 * N * 4
        if nk == 1:
            kern = functools.partial(_conv_bn_res_kernel_single, relu=relu)
            scratch = []
        else:
            kern = functools.partial(_conv_bn_res_kernel, relu=relu)
            scratch = [pltpu.VMEM((TM, N), jnp.float32)]

    out = pl.pallas_call(
        kern,
        out_shape=jax.ShapeDtypeStruct((Mp, N), out_dtype),
        grid=(nm, nk),
        in_specs=in_specs,
        out_specs=o_spec,
        scratch_shapes=scratch,
        compiler_params=cparams,
        cost_estimate=pl.CostEstimate(
            flops=flops, transcendentals=0, bytes_accessed=bytes_accessed),
    )(*operands)
    return out[:M, :Cout]


def fc_head(x, w_eff, b_eff):
    """(BN1d folded) Linear(F,1) -> Sigmoid as a VPU reduce kernel, tiled over B."""
    B, F = x.shape
    Fp = _round_up(F, 128)
    TB = min(256, _round_up(B, 8))
    Bp = _round_up(B, TB)
    xp = jnp.pad(x.astype(jnp.float32), ((0, Bp - B), (0, Fp - F)))
    wp = jnp.pad(w_eff.astype(jnp.float32).reshape(1, F), ((0, 0), (0, Fp - F)))
    bb = b_eff.astype(jnp.float32).reshape(1, 1)
    out = pl.pallas_call(
        _fc_head_kernel,
        out_shape=jax.ShapeDtypeStruct((Bp, 1), jnp.float32),
        grid=(Bp // TB,),
        in_specs=[pl.BlockSpec((TB, Fp), lambda i: (i, 0)),
                  pl.BlockSpec((1, Fp), lambda i: (0, 0)),
                  pl.BlockSpec((1, 1), lambda i: (0, 0))],
        out_specs=pl.BlockSpec((TB, 1), lambda i: (i, 0)),
        compiler_params=pltpu.CompilerParams(
            dimension_semantics=("parallel",),
            vmem_limit_bytes=_VMEM_LIMIT),
    )(xp, wp, bb)
    return out[:B, 0]


# ------------------------------- JAX glue -----------------------------------

def im2col(x, ksize, stride, pad):
    """x: NHWC -> (B*Ho*Wo, ksize*ksize*C) patch matrix, feature order (kh,kw,c)."""
    # TODO(synk): fold the 3x3 patch gather into the Pallas kernel (9 accumulated
    # matmuls over shifted NHWC slices) to avoid materializing the 9x im2col
    # matrix in HBM; kept in plain JAX here (consumed as bf16 by the kernel).
    B, H, W, C = x.shape
    xp = jnp.pad(x, ((0, 0), (pad, pad), (pad, pad), (0, 0)))
    Ho = (H + 2 * pad - ksize) // stride + 1
    Wo = (W + 2 * pad - ksize) // stride + 1
    cols = []
    for i in range(ksize):
        for j in range(ksize):
            cols.append(xp[:, i:i + (Ho - 1) * stride + 1:stride,
                           j:j + (Wo - 1) * stride + 1:stride, :])
    patches = jnp.concatenate(cols, axis=-1)  # (B, Ho, Wo, k*k*C)
    return patches.reshape(B * Ho * Wo, ksize * ksize * C), (B, Ho, Wo)


def _fold_bn(gamma, beta, mean, var, eps=1e-5):
    scale = gamma / jnp.sqrt(var + eps)
    shift = beta - mean * scale
    return scale, shift


def _bn_init(key, c):
    kg, kb, km, kv = jax.random.split(key, 4)
    gamma = 1.0 + 0.1 * jax.random.normal(kg, (c,), jnp.float32)
    beta = 0.1 * jax.random.normal(kb, (c,), jnp.float32)
    mean = 0.1 * jax.random.normal(km, (c,), jnp.float32)
    var = 1.0 + 0.1 * jax.random.uniform(kv, (c,), jnp.float32)
    return _fold_bn(gamma, beta, mean, var)


def init_params(key, in_channel, in_size, layer_num):
    params = {"blocks": []}
    c, s = in_channel, in_size
    for _ in range(layer_num):
        key, k1, k2, k3, kb1, kb2, kb3 = jax.random.split(key, 7)
        co = 2 * c
        blk = {
            "w1": 0.1 * jax.random.normal(k1, (3 * 3 * c, co), jnp.float32),
            "w2": 0.1 * jax.random.normal(k2, (3 * 3 * co, co), jnp.float32),
            "ws": 0.1 * jax.random.normal(k3, (1 * 1 * c, co), jnp.float32),
        }
        blk["s1"], blk["b1"] = _bn_init(kb1, co)
        blk["s2"], blk["b2"] = _bn_init(kb2, co)
        blk["ss"], blk["bs"] = _bn_init(kb3, co)
        params["blocks"].append(blk)
        c, s = co, (s + 1) // 2
    feat = c * s * s
    key, kw, kb, kbn = jax.random.split(key, 4)
    params["fc_w"] = 0.1 * jax.random.normal(kw, (feat, 1), jnp.float32)
    params["fc_b"] = 0.1 * jax.random.normal(kb, (1,), jnp.float32)
    params["fc_bn_scale"], params["fc_bn_shift"] = _bn_init(kbn, feat)
    return params


def res_block(x_nhwc, p):
    co = p["w1"].shape[1]
    # main path conv1 (3x3, stride 2, pad 1) + BN + ReLU (dropout = identity, eval)
    p1, (B, Ho, Wo) = im2col(x_nhwc, 3, 2, 1)
    h1 = fused_conv_bn(p1, p["w1"], p["s1"], p["b1"], relu=True,
                       out_dtype=jnp.bfloat16)     # bf16: only consumed by MXU
    h1 = h1.reshape(B, Ho, Wo, co)
    # conv2 (3x3, stride 1, pad 1) + BN, fused in-kernel with the
    # shortcut conv1x1 stride-2 + BN, then ReLU(main + shortcut).
    p2, _ = im2col(h1, 3, 1, 1)
    ps, _ = im2col(x_nhwc, 1, 2, 0)
    out = fused_conv_bn(p2, p["w2"], p["s2"], p["b2"], relu=True,
                        shortcut=(ps, p["ws"], p["ss"], p["bs"]),
                        out_dtype=jnp.bfloat16)
    return out.reshape(B, Ho, Wo, co)


def res_forward(x_nchw, params):
    # _Res.forward: res_layers -> flatten -> BN1d -> Linear -> Sigmoid -> squeeze
    x = jnp.transpose(x_nchw, (0, 2, 3, 1))  # NCHW -> NHWC
    for blk in params["blocks"]:
        x = res_block(x, blk)
    B = x.shape[0]
    # channel-major flatten to match torch's reshape(b, -1) on NCHW tensors
    flat = jnp.transpose(x, (0, 3, 1, 2)).reshape(B, -1)
    # Fold BatchNorm1d into the Linear:  (x*s + b) @ w + fb  ==  x @ (s*w) + (b@w + fb)
    w_col = params["fc_w"][:, 0]
    w_eff = params["fc_bn_scale"] * w_col
    b_eff = jnp.dot(params["fc_bn_shift"], w_col) + params["fc_b"][0]
    out = fc_head(flat, w_eff, b_eff)
    return out  # shape (B,), matches .squeeze() for B > 1


# --------------------------------- main --------------------------------------

if __name__ == "__main__":
    B, C, S = 2, 4, 16
    LAYER_NUM = 2
    key = jax.random.PRNGKey(0)
    kx, kp = jax.random.split(key)
    x = jax.random.normal(kx, (B, C, S, S), dtype=jnp.float32)
    params = init_params(kp, C, S, LAYER_NUM)

    out = jax.jit(res_forward)(x, params)
    out = jax.block_until_ready(out)

    assert out.shape == (B,), out.shape
    assert bool(jnp.all(jnp.isfinite(out)))
    assert bool(jnp.all((out >= 0.0) & (out <= 1.0)))  # sigmoid range
    print("KERNEL_OK")
</pallas_src>

<mosaic_0001>
module attributes {stable_mosaic.version = 11 : i64} {
  func.func @_conv_bn_kernel_single(%arg0: i32, %arg1: i32, %arg2: memref<128x128xbf16, #tpu.memory_space<vmem>>, %arg3: memref<128x128xbf16, #tpu.memory_space<vmem>>, %arg4: memref<1x128xf32, #tpu.memory_space<vmem>>, %arg5: memref<1x128xf32, #tpu.memory_space<vmem>>, %arg6: memref<128x128xbf16, #tpu.memory_space<vmem>>) attributes {dimension_semantics = [#tpu.dimension_semantics<parallel>, #tpu.dimension_semantics<arbitrary>], iteration_bounds = array<i64: 1, 1>, scalar_prefetch = 0 : i64, scratch_operands = 0 : i64, tpu.core_type = #tpu.core_type<tc>, window_params = [{transform_indices = @transform_0, window_bounds = array<i64: 128, 128>}, {transform_indices = @transform_1, window_bounds = array<i64: 128, 128>}, {pipeline_mode = #tpu.pipeline_mode<synchronous>, transform_indices = @transform_2, window_bounds = array<i64: 1, 128>}, {pipeline_mode = #tpu.pipeline_mode<synchronous>, transform_indices = @transform_3, window_bounds = array<i64: 1, 128>}, {transform_indices = @transform_4, window_bounds = array<i64: 128, 128>}]} {
    %c0 = arith.constant 0 : index
    %c0_0 = arith.constant 0 : index
    %0 = vector.load %arg2[%c0, %c0_0] : memref<128x128xbf16, #tpu.memory_space<vmem>>, vector<128x128xbf16>
    %c0_1 = arith.constant 0 : index
    %c0_2 = arith.constant 0 : index
    %1 = vector.load %arg3[%c0_1, %c0_2] : memref<128x128xbf16, #tpu.memory_space<vmem>>, vector<128x128xbf16>
    %cst = arith.constant dense<0.000000e+00> : vector<128x128xf32>
    %2 = tpu.matmul %0, %1, %cst {dimension_numbers = #tpu.dot_dimension_numbers<[1], [0], [0], [1], [0, 0, 1, 1], [], []>} : vector<128x128xbf16>, vector<128x128xbf16>, vector<128x128xf32> -> vector<128x128xf32>
    %c0_3 = arith.constant 0 : index
    %c0_4 = arith.constant 0 : index
    %3 = vector.load %arg4[%c0_3, %c0_4] : memref<1x128xf32, #tpu.memory_space<vmem>>, vector<1x128xf32>
    %4 = vector.broadcast %3 : vector<1x128xf32> to vector<128x128xf32>
    %5 = arith.mulf %2, %4 : vector<128x128xf32>
    %c0_5 = arith.constant 0 : index
    %c0_6 = arith.constant 0 : index
    %6 = vector.load %arg5[%c0_5, %c0_6] : memref<1x128xf32, #tpu.memory_space<vmem>>, vector<1x128xf32>
    %7 = vector.broadcast %6 : vector<1x128xf32> to vector<128x128xf32>
    %8 = arith.addf %5, %7 : vector<128x128xf32>
    %cst_7 = arith.constant 0.000000e+00 : f32
    %9 = vector.broadcast %cst_7 : f32 to vector<128x128xf32>
    %10 = arith.maximumf %8, %9 : vector<128x128xf32>
    %11 = arith.truncf %10 : vector<128x128xf32> to vector<128x128xbf16>
    %c0_8 = arith.constant 0 : index
    %c0_9 = arith.constant 0 : index
    %12 = vector.load %arg6[%c0_8, %c0_9] : memref<128x128xbf16, #tpu.memory_space<vmem>>, vector<128x128xbf16>
    tpu.vector_store %arg6[%c0_8, %c0_9], %11 {strides = array<i32>} : memref<128x128xbf16, #tpu.memory_space<vmem>>, vector<128x128xbf16>,
    return
  }
  func.func @transform_0(%arg0: i32, %arg1: i32) -> (i32, i32) {
    %c0_i32 = arith.constant 0 : i32
    return %arg0, %arg1 : i32, i32
  }
  func.func @transform_1(%arg0: i32, %arg1: i32) -> (i32, i32) {
    %c0_i32 = arith.constant 0 : i32
    %c0_i32_0 = arith.constant 0 : i32
    return %arg1, %c0_i32 : i32, i32
  }
  func.func @transform_2(%arg0: i32, %arg1: i32) -> (i32, i32) {
    %c0_i32 = arith.constant 0 : i32
    %c0_i32_0 = arith.constant 0 : i32
    %c0_i32_1 = arith.constant 0 : i32
    return %c0_i32, %c0_i32_0 : i32, i32
  }
  func.func @transform_3(%arg0: i32, %arg1: i32) -> (i32, i32) {
    %c0_i32 = arith.constant 0 : i32
    %c0_i32_0 = arith.constant 0 : i32
    %c0_i32_1 = arith.constant 0 : i32
    return %c0_i32, %c0_i32_0 : i32, i32
  }
  func.func @transform_4(%arg0: i32, %arg1: i32) -> (i32, i32) {
    %c0_i32 = arith.constant 0 : i32
    %c0_i32_0 = arith.constant 0 : i32
    return %arg0, %c0_i32 : i32, i32
  }
}

module attributes {stable_mosaic.version = 11 : i64} {
  func.func @_conv_bn_res_kernel_single(%arg0: i32, %arg1: i32, %arg2: memref<128x128xbf16, #tpu.memory_space<vmem>>, %arg3: memref<128x128xbf16, #tpu.memory_space<vmem>>, %arg4: memref<1x128xf32, #tpu.memory_space<vmem>>, %arg5: memref<1x128xf32, #tpu.memory_space<vmem>>, %arg6: memref<128x128xbf16, #tpu.memory_space<vmem>>, %arg7: memref<128x128xbf16, #tpu.memory_space<vmem>>, %arg8: memref<1x128xf32, #tpu.memory_space<vmem>>, %arg9: memref<1x128xf32, #tpu.memory_space<vmem>>, %arg10: memref<128x128xbf16, #tpu.memory_space<vmem>>) attributes {dimension_semantics = [#tpu.dimension_semantics<parallel>, #tpu.dimension_semantics<arbitrary>], iteration_bounds = array<i64: 1, 1>, scalar_prefetch = 0 : i64, scratch_operands = 0 : i64, tpu.core_type = #tpu.core_type<tc>, window_params = [{transform_indices = @transform_0, window_bounds = array<i64: 128, 128>}, {transform_indices = @transform_1, window_bounds = array<i64: 128, 128>}, {pipeline_mode = #tpu.pipeline_mode<synchronous>, transform_indices = @transform_2, window_bounds = array<i64: 1, 128>}, {pipeline_mode = #tpu.pipeline_mode<synchronous>, transform_indices = @transform_3, window_bounds = array<i64: 1, 128>}, {transform_indices = @transform_4, window_bounds = array<i64: 128, 128>}, {pipeline_mode = #tpu.pipeline_mode<synchronous>, transform_indices = @transform_5, window_bounds = array<i64: 128, 128>}, {pipeline_mode = #tpu.pipeline_mode<synchronous>, transform_indices = @transform_6, window_bounds = array<i64: 1, 128>}, {pipeline_mode = #tpu.pipeline_mode<synchronous>, transform_indices = @transform_7, window_bounds = array<i64: 1, 128>}, {transform_indices = @transform_8, window_bounds = array<i64: 128, 128>}]} {
    %c0 = arith.constant 0 : index
    %c0_0 = arith.constant 0 : index
    %0 = vector.load %arg2[%c0, %c0_0] : memref<128x128xbf16, #tpu.memory_space<vmem>>, vector<128x128xbf16>
    %c0_1 = arith.constant 0 : index
    %c0_2 = arith.constant 0 : index
    %1 = vector.load %arg3[%c0_1, %c0_2] : memref<128x128xbf16, #tpu.memory_space<vmem>>, vector<128x128xbf16>
    %cst = arith.constant dense<0.000000e+00> : vector<128x128xf32>
    %2 = tpu.matmul %0, %1, %cst {dimension_numbers = #tpu.dot_dimension_numbers<[1], [0], [0], [1], [0, 0, 1, 1], [], []>} : vector<128x128xbf16>, vector<128x128xbf16>, vector<128x128xf32> -> vector<128x128xf32>
    %c0_3 = arith.constant 0 : index
    %c0_4 = arith.constant 0 : index
    %3 = vector.load %arg6[%c0_3, %c0_4] : memref<128x128xbf16, #tpu.memory_space<vmem>>, vector<128x128xbf16>
    %c0_5 = arith.constant 0 : index
    %c0_6 = arith.constant 0 : index
    %4 = vector.load %arg7[%c0_5, %c0_6] : memref<128x128xbf16, #tpu.memory_space<vmem>>, vector<128x128xbf16>
    %cst_7 = arith.constant dense<0.000000e+00> : vector<128x128xf32>
    %5 = tpu.matmul %3, %4, %cst_7 {dimension_numbers = #tpu.dot_dimension_numbers<[1], [0], [0], [1], [0, 0, 1, 1], [], []>} : vector<128x128xbf16>, vector<128x128xbf16>, vector<128x128xf32> -> vector<128x128xf32>
    %c0_8 = arith.constant 0 : index
    %c0_9 = arith.constant 0 : index
    %6 = vector.load %arg4[%c0_8, %c0_9] : memref<1x128xf32, #tpu.memory_space<vmem>>, vector<1x128xf32>
    %7 = vector.broadcast %6 : vector<1x128xf32> to vector<128x128xf32>
    %8 = arith.mulf %2, %7 : vector<128x128xf32>
    %c0_10 = arith.constant 0 : index
    %c0_11 = arith.constant 0 : index
    %9 = vector.load %arg5[%c0_10, %c0_11] : memref<1x128xf32, #tpu.memory_space<vmem>>, vector<1x128xf32>
    %10 = vector.broadcast %9 : vector<1x128xf32> to vector<128x128xf32>
    %11 = arith.addf %8, %10 : vector<128x128xf32>
    %c0_12 = arith.constant 0 : index
    %c0_13 = arith.constant 0 : index
    %12 = vector.load %arg8[%c0_12, %c0_13] : memref<1x128xf32, #tpu.memory_space<vmem>>, vector<1x128xf32>
    %13 = vector.broadcast %12 : vector<1x128xf32> to vector<128x128xf32>
    %14 = arith.mulf %5, %13 : vector<128x128xf32>
    %15 = arith.addf %11, %14 : vector<128x128xf32>
    %c0_14 = arith.constant 0 : index
    %c0_15 = arith.constant 0 : index
    %16 = vector.load %arg9[%c0_14, %c0_15] : memref<1x128xf32, #tpu.memory_space<vmem>>, vector<1x128xf32>
    %17 = vector.broadcast %16 : vector<1x128xf32> to vector<128x128xf32>
    %18 = arith.addf %15, %17 : vector<128x128xf32>
    %cst_16 = arith.constant 0.000000e+00 : f32
    %19 = vector.broadcast %cst_16 : f32 to vector<128x128xf32>
    %20 = arith.maximumf %18, %19 : vector<128x128xf32>
    %21 = arith.truncf %20 : vector<128x128xf32> to vector<128x128xbf16>
    %c0_17 = arith.constant 0 : index
    %c0_18 = arith.constant 0 : index
    %22 = vector.load %arg10[%c0_17, %c0_18] : memref<128x128xbf16, #tpu.memory_space<vmem>>, vector<128x128xbf16>
    tpu.vector_store %arg10[%c0_17, %c0_18], %21 {strides = array<i32>} : memref<128x128xbf16, #tpu.memory_space<vmem>>, vector<128x128xbf16>,
    return
  }
  func.func @transform_0(%arg0: i32, %arg1: i32) -> (i32, i32) {
    %c0_i32 = arith.constant 0 : i32
    return %arg0, %arg1 : i32, i32
  }
  func.func @transform_1(%arg0: i32, %arg1: i32) -> (i32, i32) {
    %c0_i32 = arith.constant 0 : i32
    %c0_i32_0 = arith.constant 0 : i32
    return %arg1, %c0_i32 : i32, i32
  }
  func.func @transform_2(%arg0: i32, %arg1: i32) -> (i32, i32) {
    %c0_i32 = arith.constant 0 : i32
    %c0_i32_0 = arith.constant 0 : i32
    %c0_i32_1 = arith.constant 0 : i32
    return %c0_i32, %c0_i32_0 : i32, i32
  }
  func.func @transform_3(%arg0: i32, %arg1: i32) -> (i32, i32) {
    %c0_i32 = arith.constant 0 : i32
    %c0_i32_0 = arith.constant 0 : i32
    %c0_i32_1 = arith.constant 0 : i32
    return %c0_i32, %c0_i32_0 : i32, i32
  }
  func.func @transform_4(%arg0: i32, %arg1: i32) -> (i32, i32) {
    %c0_i32 = arith.constant 0 : i32
    %c0_i32_0 = arith.constant 0 : i32
    return %arg0, %c0_i32 : i32, i32
  }
  func.func @transform_5(%arg0: i32, %arg1: i32) -> (i32, i32) {
    %c0_i32 = arith.constant 0 : i32
    %c0_i32_0 = arith.constant 0 : i32
    %c0_i32_1 = arith.constant 0 : i32
    return %c0_i32, %c0_i32_0 : i32, i32
  }
  func.func @transform_6(%arg0: i32, %arg1: i32) -> (i32, i32) {
    %c0_i32 = arith.constant 0 : i32
    %c0_i32_0 = arith.constant 0 : i32
    %c0_i32_1 = arith.constant 0 : i32
    return %c0_i32, %c0_i32_0 : i32, i32
  }
  func.func @transform_7(%arg0: i32, %arg1: i32) -> (i32, i32) {
    %c0_i32 = arith.constant 0 : i32
    %c0_i32_0 = arith.constant 0 : i32
    %c0_i32_1 = arith.constant 0 : i32
    return %c0_i32, %c0_i32_0 : i32, i32
  }
  func.func @transform_8(%arg0: i32, %arg1: i32) -> (i32, i32) {
    %c0_i32 = arith.constant 0 : i32
    %c0_i32_0 = arith.constant 0 : i32
    return %arg0, %c0_i32 : i32, i32
  }
}

module attributes {stable_mosaic.version = 11 : i64} {
  func.func @_conv_bn_kernel_single(%arg0: i32, %arg1: i32, %arg2: memref<32x128xbf16, #tpu.memory_space<vmem>>, %arg3: memref<128x128xbf16, #tpu.memory_space<vmem>>, %arg4: memref<1x128xf32, #tpu.memory_space<vmem>>, %arg5: memref<1x128xf32, #tpu.memory_space<vmem>>, %arg6: memref<32x128xbf16, #tpu.memory_space<vmem>>) attributes {dimension_semantics = [#tpu.dimension_semantics<parallel>, #tpu.dimension_semantics<arbitrary>], iteration_bounds = array<i64: 1, 1>, scalar_prefetch = 0 : i64, scratch_operands = 0 : i64, tpu.core_type = #tpu.core_type<tc>, window_params = [{transform_indices = @transform_0, window_bounds = array<i64: 32, 128>}, {transform_indices = @transform_1, window_bounds = array<i64: 128, 128>}, {pipeline_mode = #tpu.pipeline_mode<synchronous>, transform_indices = @transform_2, window_bounds = array<i64: 1, 128>}, {pipeline_mode = #tpu.pipeline_mode<synchronous>, transform_indices = @transform_3, window_bounds = array<i64: 1, 128>}, {transform_indices = @transform_4, window_bounds = array<i64: 32, 128>}]} {
    %c0 = arith.constant 0 : index
    %c0_0 = arith.constant 0 : index
    %0 = vector.load %arg2[%c0, %c0_0] : memref<32x128xbf16, #tpu.memory_space<vmem>>, vector<32x128xbf16>
    %c0_1 = arith.constant 0 : index
    %c0_2 = arith.constant 0 : index
    %1 = vector.load %arg3[%c0_1, %c0_2] : memref<128x128xbf16, #tpu.memory_space<vmem>>, vector<128x128xbf16>
    %cst = arith.constant dense<0.000000e+00> : vector<32x128xf32>
    %2 = tpu.matmul %0, %1, %cst {dimension_numbers = #tpu.dot_dimension_numbers<[1], [0], [0], [1], [0, 0, 1, 1], [], []>} : vector<32x128xbf16>, vector<128x128xbf16>, vector<32x128xf32> -> vector<32x128xf32>
    %c0_3 = arith.constant 0 : index
    %c0_4 = arith.constant 0 : index
    %3 = vector.load %arg4[%c0_3, %c0_4] : memref<1x128xf32, #tpu.memory_space<vmem>>, vector<1x128xf32>
    %4 = vector.broadcast %3 : vector<1x128xf32> to vector<32x128xf32>
    %5 = arith.mulf %2, %4 : vector<32x128xf32>
    %c0_5 = arith.constant 0 : index
    %c0_6 = arith.constant 0 : index
    %6 = vector.load %arg5[%c0_5, %c0_6] : memref<1x128xf32, #tpu.memory_space<vmem>>, vector<1x128xf32>
    %7 = vector.broadcast %6 : vector<1x128xf32> to vector<32x128xf32>
    %8 = arith.addf %5, %7 : vector<32x128xf32>
    %cst_7 = arith.constant 0.000000e+00 : f32
    %9 = vector.broadcast %cst_7 : f32 to vector<32x128xf32>
    %10 = arith.maximumf %8, %9 : vector<32x128xf32>
    %11 = arith.truncf %10 : vector<32x128xf32> to vector<32x128xbf16>
    %c0_8 = arith.constant 0 : index
    %c0_9 = arith.constant 0 : index
    %12 = vector.load %arg6[%c0_8, %c0_9] : memref<32x128xbf16, #tpu.memory_space<vmem>>, vector<32x128xbf16>
    tpu.vector_store %arg6[%c0_8, %c0_9], %11 {strides = array<i32>} : memref<32x128xbf16, #tpu.memory_space<vmem>>, vector<32x128xbf16>,
    return
  }
  func.func @transform_0(%arg0: i32, %arg1: i32) -> (i32, i32) {
    %c0_i32 = arith.constant 0 : i32
    return %arg0, %arg1 : i32, i32
  }
  func.func @transform_1(%arg0: i32, %arg1: i32) -> (i32, i32) {
    %c0_i32 = arith.constant 0 : i32
    %c0_i32_0 = arith.constant 0 : i32
    return %arg1, %c0_i32 : i32, i32
  }
  func.func @transform_2(%arg0: i32, %arg1: i32) -> (i32, i32) {
    %c0_i32 = arith.constant 0 : i32
    %c0_i32_0 = arith.constant 0 : i32
    %c0_i32_1 = arith.constant 0 : i32
    return %c0_i32, %c0_i32_0 : i32, i32
  }
  func.func @transform_3(%arg0: i32, %arg1: i32) -> (i32, i32) {
    %c0_i32 = arith.constant 0 : i32
    %c0_i32_0 = arith.constant 0 : i32
    %c0_i32_1 = arith.constant 0 : i32
    return %c0_i32, %c0_i32_0 : i32, i32
  }
  func.func @transform_4(%arg0: i32, %arg1: i32) -> (i32, i32) {
    %c0_i32 = arith.constant 0 : i32
    %c0_i32_0 = arith.constant 0 : i32
    return %arg0, %c0_i32 : i32, i32
  }
}

module attributes {stable_mosaic.version = 11 : i64} {
  func.func @_conv_bn_res_kernel_single(%arg0: i32, %arg1: i32, %arg2: memref<32x256xbf16, #tpu.memory_space<vmem>>, %arg3: memref<256x128xbf16, #tpu.memory_space<vmem>>, %arg4: memref<1x128xf32, #tpu.memory_space<vmem>>, %arg5: memref<1x128xf32, #tpu.memory_space<vmem>>, %arg6: memref<32x128xbf16, #tpu.memory_space<vmem>>, %arg7: memref<128x128xbf16, #tpu.memory_space<vmem>>, %arg8: memref<1x128xf32, #tpu.memory_space<vmem>>, %arg9: memref<1x128xf32, #tpu.memory_space<vmem>>, %arg10: memref<32x128xbf16, #tpu.memory_space<vmem>>) attributes {dimension_semantics = [#tpu.dimension_semantics<parallel>, #tpu.dimension_semantics<arbitrary>], iteration_bounds = array<i64: 1, 1>, scalar_prefetch = 0 : i64, scratch_operands = 0 : i64, tpu.core_type = #tpu.core_type<tc>, window_params = [{transform_indices = @transform_0, window_bounds = array<i64: 32, 256>}, {transform_indices = @transform_1, window_bounds = array<i64: 256, 128>}, {pipeline_mode = #tpu.pipeline_mode<synchronous>, transform_indices = @transform_2, window_bounds = array<i64: 1, 128>}, {pipeline_mode = #tpu.pipeline_mode<synchronous>, transform_indices = @transform_3, window_bounds = array<i64: 1, 128>}, {transform_indices = @transform_4, window_bounds = array<i64: 32, 128>}, {pipeline_mode = #tpu.pipeline_mode<synchronous>, transform_indices = @transform_5, window_bounds = array<i64: 128, 128>}, {pipeline_mode = #tpu.pipeline_mode<synchronous>, transform_indices = @transform_6, window_bounds = array<i64: 1, 128>}, {pipeline_mode = #tpu.pipeline_mode<synchronous>, transform_indices = @transform_7, window_bounds = array<i64: 1, 128>}, {transform_indices = @transform_8, window_bounds = array<i64: 32, 128>}]} {
    %c0 = arith.constant 0 : index
    %c0_0 = arith.constant 0 : index
    %0 = vector.load %arg2[%c0, %c0_0] : memref<32x256xbf16, #tpu.memory_space<vmem>>, vector<32x256xbf16>
    %c0_1 = arith.constant 0 : index
    %c0_2 = arith.constant 0 : index
    %1 = vector.load %arg3[%c0_1, %c0_2] : memref<256x128xbf16, #tpu.memory_space<vmem>>, vector<256x128xbf16>
    %cst = arith.constant dense<0.000000e+00> : vector<32x128xf32>
    %2 = tpu.matmul %0, %1, %cst {dimension_numbers = #tpu.dot_dimension_numbers<[1], [0], [0], [1], [0, 0, 1, 1], [], []>} : vector<32x256xbf16>, vector<256x128xbf16>, vector<32x128xf32> -> vector<32x128xf32>
    %c0_3 = arith.constant 0 : index
    %c0_4 = arith.constant 0 : index
    %3 = vector.load %arg6[%c0_3, %c0_4] : memref<32x128xbf16, #tpu.memory_space<vmem>>, vector<32x128xbf16>
    %c0_5 = arith.constant 0 : index
    %c0_6 = arith.constant 0 : index
    %4 = vector.load %arg7[%c0_5, %c0_6] : memref<128x128xbf16, #tpu.memory_space<vmem>>, vector<128x128xbf16>
    %cst_7 = arith.constant dense<0.000000e+00> : vector<32x128xf32>
    %5 = tpu.matmul %3, %4, %cst_7 {dimension_numbers = #tpu.dot_dimension_numbers<[1], [0], [0], [1], [0, 0, 1, 1], [], []>} : vector<32x128xbf16>, vector<128x128xbf16>, vector<32x128xf32> -> vector<32x128xf32>
    %c0_8 = arith.constant 0 : index
    %c0_9 = arith.constant 0 : index
    %6 = vector.load %arg4[%c0_8, %c0_9] : memref<1x128xf32, #tpu.memory_space<vmem>>, vector<1x128xf32>
    %7 = vector.broadcast %6 : vector<1x128xf32> to vector<32x128xf32>
    %8 = arith.mulf %2, %7 : vector<32x128xf32>
    %c0_10 = arith.constant 0 : index
    %c0_11 = arith.constant 0 : index
    %9 = vector.load %arg5[%c0_10, %c0_11] : memref<1x128xf32, #tpu.memory_space<vmem>>, vector<1x128xf32>
    %10 = vector.broadcast %9 : vector<1x128xf32> to vector<32x128xf32>
    %11 = arith.addf %8, %10 : vector<32x128xf32>
    %c0_12 = arith.constant 0 : index
    %c0_13 = arith.constant 0 : index
    %12 = vector.load %arg8[%c0_12, %c0_13] : memref<1x128xf32, #tpu.memory_space<vmem>>, vector<1x128xf32>
    %13 = vector.broadcast %12 : vector<1x128xf32> to vector<32x128xf32>
    %14 = arith.mulf %5, %13 : vector<32x128xf32>
    %15 = arith.addf %11, %14 : vector<32x128xf32>
    %c0_14 = arith.constant 0 : index
    %c0_15 = arith.constant 0 : index
    %16 = vector.load %arg9[%c0_14, %c0_15] : memref<1x128xf32, #tpu.memory_space<vmem>>, vector<1x128xf32>
    %17 = vector.broadcast %16 : vector<1x128xf32> to vector<32x128xf32>
    %18 = arith.addf %15, %17 : vector<32x128xf32>
    %cst_16 = arith.constant 0.000000e+00 : f32
    %19 = vector.broadcast %cst_16 : f32 to vector<32x128xf32>
    %20 = arith.maximumf %18, %19 : vector<32x128xf32>
    %21 = arith.truncf %20 : vector<32x128xf32> to vector<32x128xbf16>
    %c0_17 = arith.constant 0 : index
    %c0_18 = arith.constant 0 : index
    %22 = vector.load %arg10[%c0_17, %c0_18] : memref<32x128xbf16, #tpu.memory_space<vmem>>, vector<32x128xbf16>
    tpu.vector_store %arg10[%c0_17, %c0_18], %21 {strides = array<i32>} : memref<32x128xbf16, #tpu.memory_space<vmem>>, vector<32x128xbf16>,
    return
  }
  func.func @transform_0(%arg0: i32, %arg1: i32) -> (i32, i32) {
    %c0_i32 = arith.constant 0 : i32
    return %arg0, %arg1 : i32, i32
  }
  func.func @transform_1(%arg0: i32, %arg1: i32) -> (i32, i32) {
    %c0_i32 = arith.constant 0 : i32
    %c0_i32_0 = arith.constant 0 : i32
    return %arg1, %c0_i32 : i32, i32
  }
  func.func @transform_2(%arg0: i32, %arg1: i32) -> (i32, i32) {
    %c0_i32 = arith.constant 0 : i32
    %c0_i32_0 = arith.constant 0 : i32
    %c0_i32_1 = arith.constant 0 : i32
    return %c0_i32, %c0_i32_0 : i32, i32
  }
  func.func @transform_3(%arg0: i32, %arg1: i32) -> (i32, i32) {
    %c0_i32 = arith.constant 0 : i32
    %c0_i32_0 = arith.constant 0 : i32
    %c0_i32_1 = arith.constant 0 : i32
    return %c0_i32, %c0_i32_0 : i32, i32
  }
  func.func @transform_4(%arg0: i32, %arg1: i32) -> (i32, i32) {
    %c0_i32 = arith.constant 0 : i32
    %c0_i32_0 = arith.constant 0 : i32
    return %arg0, %c0_i32 : i32, i32
  }
  func.func @transform_5(%arg0: i32, %arg1: i32) -> (i32, i32) {
    %c0_i32 = arith.constant 0 : i32
    %c0_i32_0 = arith.constant 0 : i32
    %c0_i32_1 = arith.constant 0 : i32
    return %c0_i32, %c0_i32_0 : i32, i32
  }
  func.func @transform_6(%arg0: i32, %arg1: i32) -> (i32, i32) {
    %c0_i32 = arith.constant 0 : i32
    %c0_i32_0 = arith.constant 0 : i32
    %c0_i32_1 = arith.constant 0 : i32
    return %c0_i32, %c0_i32_0 : i32, i32
  }
  func.func @transform_7(%arg0: i32, %arg1: i32) -> (i32, i32) {
    %c0_i32 = arith.constant 0 : i32
    %c0_i32_0 = arith.constant 0 : i32
    %c0_i32_1 = arith.constant 0 : i32
    return %c0_i32, %c0_i32_0 : i32, i32
  }
  func.func @transform_8(%arg0: i32, %arg1: i32) -> (i32, i32) {
    %c0_i32 = arith.constant 0 : i32
    %c0_i32_0 = arith.constant 0 : i32
    return %arg0, %c0_i32 : i32, i32
  }
}

module attributes {stable_mosaic.version = 11 : i64} {
  func.func @_fc_head_kernel(%arg0: i32, %arg1: memref<8x256xf32, #tpu.memory_space<vmem>>, %arg2: memref<1x256xf32, #tpu.memory_space<vmem>>, %arg3: memref<1x1xf32, #tpu.memory_space<vmem>>, %arg4: memref<8x1xf32, #tpu.memory_space<vmem>>) attributes {dimension_semantics = [#tpu.dimension_semantics<parallel>], iteration_bounds = array<i64: 1>, scalar_prefetch = 0 : i64, scratch_operands = 0 : i64, tpu.core_type = #tpu.core_type<tc>, window_params = [{transform_indices = @transform_0, window_bounds = array<i64: 8, 256>}, {pipeline_mode = #tpu.pipeline_mode<synchronous>, transform_indices = @transform_1, window_bounds = array<i64: 1, 256>}, {pipeline_mode = #tpu.pipeline_mode<synchronous>, transform_indices = @transform_2, window_bounds = array<i64: 1, 1>}, {transform_indices = @transform_3, window_bounds = array<i64: 8, 1>}]} {
    %c0 = arith.constant 0 : index
    %c0_0 = arith.constant 0 : index
    %0 = vector.load %arg1[%c0, %c0_0] : memref<8x256xf32, #tpu.memory_space<vmem>>, vector<8x256xf32>
    %c0_1 = arith.constant 0 : index
    %c0_2 = arith.constant 0 : index
    %1 = vector.load %arg2[%c0_1, %c0_2] : memref<1x256xf32, #tpu.memory_space<vmem>>, vector<1x256xf32>
    %2 = vector.broadcast %1 : vector<1x256xf32> to vector<8x256xf32>
    %3 = arith.mulf %0, %2 : vector<8x256xf32>
    %cst = arith.constant dense<0.000000e+00> : vector<8xf32>
    %4 = vector.multi_reduction <add>, %3, %cst [1] : vector<8x256xf32> to vector<8xf32>
    %5 = vector.shape_cast %4 : vector<8xf32> to vector<8x1xf32>
    %c0_3 = arith.constant 0 : index
    %c0_4 = arith.constant 0 : index
    %6 = vector.load %arg3[%c0_3, %c0_4] : memref<1x1xf32, #tpu.memory_space<vmem>>, vector<1x1xf32>
    %7 = vector.broadcast %6 : vector<1x1xf32> to vector<8x1xf32>
    %8 = arith.addf %5, %7 : vector<8x1xf32>
    %9 = arith.negf %8 : vector<8x1xf32>
    %10 = math.exp %9 : vector<8x1xf32>
    %cst_5 = arith.constant 1.000000e+00 : f32
    %11 = vector.broadcast %cst_5 : f32 to vector<8x1xf32>
    %12 = arith.addf %11, %10 : vector<8x1xf32>
    %13 = arith.divf %11, %12 : vector<8x1xf32>
    %c0_6 = arith.constant 0 : index
    %c0_7 = arith.constant 0 : index
    %14 = vector.load %arg4[%c0_6, %c0_7] : memref<8x1xf32, #tpu.memory_space<vmem>>, vector<8x1xf32>
    tpu.vector_store %arg4[%c0_6, %c0_7], %13 {strides = array<i32>} : memref<8x1xf32, #tpu.memory_space<vmem>>, vector<8x1xf32>,
    return
  }
  func.func @transform_0(%arg0: i32) -> (i32, i32) {
    %c0_i32 = arith.constant 0 : i32
    %c0_i32_0 = arith.constant 0 : i32
    return %arg0, %c0_i32 : i32, i32
  }
  func.func @transform_1(%arg0: i32) -> (i32, i32) {
    %c0_i32 = arith.constant 0 : i32
    %c0_i32_0 = arith.constant 0 : i32
    %c0_i32_1 = arith.constant 0 : i32
    return %c0_i32, %c0_i32_0 : i32, i32
  }
  func.func @transform_2(%arg0: i32) -> (i32, i32) {
    %c0_i32 = arith.constant 0 : i32
    %c0_i32_0 = arith.constant 0 : i32
    %c0_i32_1 = arith.constant 0 : i32
    return %c0_i32, %c0_i32_0 : i32, i32
  }
  func.func @transform_3(%arg0: i32) -> (i32, i32) {
    %c0_i32 = arith.constant 0 : i32
    %c0_i32_0 = arith.constant 0 : i32
    return %arg0, %c0_i32 : i32, i32
  }
}

</mosaic_0001>

<llo_original>
// kernel: res_forward.5
$region0: #{res_forward.5}
  #allocation0 [shape = 'u32[]', space=smem, size = 0x4, offset = 0x4, fixed_abs, tag = 'smem constant byte address 0x4 - core index']
  #allocation1 [shape = 'u32[144,128]{1,0:T(1,128)}', space=vmem, size = 0x12000, scoped, tag = 'internal scratch']
  %s0 = inlined_call_operand.vmem [shape: bf16[128,128], index: 0, kind: input, shape index: {}]
  %s1 = inlined_call_operand.vmem [shape: bf16[128,128], index: 1, kind: input, shape index: {}]
  %s2 = inlined_call_operand.vmem [shape: f32[1,128], index: 2, kind: input, shape index: {}]
  %s3 = inlined_call_operand.vmem [shape: f32[1,128], index: 3, kind: input, shape index: {}]
  %s4 = inlined_call_operand.vmem [shape: bf16[128,128], index: 4, kind: output, shape index: {}]
  %s5 = sld [smem:[#allocation0]]
  $region26: #{res_forward.5} parent=0
    _
  %s7 = ssub.s32 1, %s5
  %s8 = scalar_select 0, %s7, %s5
  // Predicated region
  $region2: #{res_forward.5} parent=0 // pred_check
    _
  $region3: #{res_forward.5} parent=0 // pred_check_branch
    %10 = sbr.rel (0) target = $region5
  $region4: #{res_forward.5} parent=0 // pred_region
    _
  $region5: #{res_forward.5} parent=0 // pred_fallthru
    _
  // Predicated region
  $region6: #{res_forward.5} parent=0 // pred_check
    _
  $region7: #{res_forward.5} parent=0 // pred_check_branch
    %12 = sbr.rel (0) target = $region9
  $region8: #{res_forward.5} parent=0 // pred_region
    _
  $region9: #{res_forward.5} parent=0 // pred_fallthru
    _
  // Predicated region
  $region10: #{res_forward.5} parent=0 // pred_check
    _
  $region11: #{res_forward.5} parent=0 // pred_check_branch
    %14 = sbr.rel (0) target = $region13
  $region12: #{res_forward.5} parent=0 // pred_region
    _
  $region13: #{res_forward.5} parent=0 // pred_fallthru
    _
  // Predicated region
  $region14: #{res_forward.5} parent=0 // pred_check
    _
  $region15: #{res_forward.5} parent=0 // pred_check_branch
    %16 = sbr.rel (0) target = $region17
  $region16: #{res_forward.5} parent=0 // pred_region
    _
  $region17: #{res_forward.5} parent=0 // pred_fallthru
    _
  %v18 = vld [vmem:[%s0] sm:$0xf]
  %v19 = vld [vmem:[%s0 + $0x4] sm:$0xf]
  %v20 = vld [vmem:[%s0 + $0x8] sm:$0xf]
  %v21 = vld [vmem:[%s0 + $0xc] sm:$0xf]
  %v22 = vld [vmem:[%s0 + $0x10] sm:$0xf]
  %v23 = vld [vmem:[%s0 + $0x14] sm:$0xf]
  %v24 = vld [vmem:[%s0 + $0x18] sm:$0xf]
  %v25 = vld [vmem:[%s0 + $0x1c] sm:$0xf]
  %v26 = vld [vmem:[%s0 + $0x20] sm:$0xf]
  %v27 = vld [vmem:[%s0 + $0x24] sm:$0xf]
  %v28 = vld [vmem:[%s0 + $0x28] sm:$0xf]
  %v29 = vld [vmem:[%s0 + $0x2c] sm:$0xf]
  %v30 = vld [vmem:[%s0 + $0x30] sm:$0xf]
  %v31 = vld [vmem:[%s0 + $0x34] sm:$0xf]
  %v32 = vld [vmem:[%s0 + $0x38] sm:$0xf]
  %v33 = vld [vmem:[%s0 + $0x3c] sm:$0xf]
  %v34 = vld [vmem:[%s1] sm:$0xf]
  %v35 = vld [vmem:[%s1 + $0x4] sm:$0xf]
  %v36 = vld [vmem:[%s1 + $0x8] sm:$0xf]
  %v37 = vld [vmem:[%s1 + $0xc] sm:$0xf]
  %v38 = vld [vmem:[%s1 + $0x10] sm:$0xf]
  %v39 = vld [vmem:[%s1 + $0x14] sm:$0xf]
  %v40 = vld [vmem:[%s1 + $0x18] sm:$0xf]
  %v41 = vld [vmem:[%s1 + $0x1c] sm:$0xf]
  %v42 = vld [vmem:[%s1 + $0x20] sm:$0xf]
  %v43 = vld [vmem:[%s1 + $0x24] sm:$0xf]
  %v44 = vld [vmem:[%s1 + $0x28] sm:$0xf]
  %v45 = vld [vmem:[%s1 + $0x2c] sm:$0xf]
  %v46 = vld [vmem:[%s1 + $0x30] sm:$0xf]
  %v47 = vld [vmem:[%s1 + $0x34] sm:$0xf]
  %v48 = vld [vmem:[%s1 + $0x38] sm:$0xf]
  %v49 = vld [vmem:[%s1 + $0x3c] sm:$0xf]
  %v66 = vunpack.c.l.b16 %v18
  %v67 = vunpack.c.l.b16 %v19
  %v68 = vunpack.c.l.b16 %v20
  %v69 = vunpack.c.l.b16 %v21
  %v70 = vunpack.c.l.b16 %v22
  %v71 = vunpack.c.l.b16 %v23
  %v72 = vunpack.c.l.b16 %v24
  %v73 = vunpack.c.l.b16 %v25
  %v74 = vunpack.c.l.b16 %v26
  %v75 = vunpack.c.l.b16 %v27
  %v76 = vunpack.c.l.b16 %v28
  %v77 = vunpack.c.l.b16 %v29
  %v78 = vunpack.c.l.b16 %v30
  %v79 = vunpack.c.l.b16 %v31
  %v80 = vunpack.c.l.b16 %v32
  %v81 = vunpack.c.l.b16 %v33
  %v82 = vpack.c.b16 %v67, %v66
  %v83 = vpack.c.b16 %v69, %v68
  %v84 = vpack.c.b16 %v71, %v70
  %v85 = vpack.c.b16 %v73, %v72
  %v86 = vpack.c.b16 %v75, %v74
  %v87 = vpack.c.b16 %v77, %v76
  %v88 = vpack.c.b16 %v79, %v78
  %v89 = vpack.c.b16 %v81, %v80
  %v114 = vunpack.c.l.b16 %v34
  %v115 = vunpack.c.l.b16 %v35
  %v116 = vunpack.c.l.b16 %v36
  %v117 = vunpack.c.l.b16 %v37
  %v118 = vunpack.c.l.b16 %v38
  %v119 = vunpack.c.l.b16 %v39
  %v120 = vunpack.c.l.b16 %v40
  %v121 = vunpack.c.l.b16 %v41
  %v122 = vunpack.c.l.b16 %v42
  %v123 = vunpack.c.l.b16 %v43
  %v124 = vunpack.c.l.b16 %v44
  %v125 = vunpack.c.l.b16 %v45
  %v126 = vunpack.c.l.b16 %v46
  %v127 = vunpack.c.l.b16 %v47
  %v128 = vunpack.c.l.b16 %v48
  %v129 = vunpack.c.l.b16 %v49
  %v130 = vpack.c.b16 %v115, %v114
  %v131 = vpack.c.b16 %v117, %v116
  %v132 = vpack.c.b16 %v119, %v118
  %v133 = vpack.c.b16 %v121, %v120
  %v134 = vpack.c.b16 %v123, %v122
  %v135 = vpack.c.b16 %v125, %v124
  %v136 = vpack.c.b16 %v127, %v126
  %v137 = vpack.c.b16 %v129, %v128
  %146 = vmatprep.subr.bf16.mxu0 0
  %147 = vmatpush1.bf16.msra.mxu0 %v130
  %148 = vmatprep.subr.bf16.mxu0 0
  %149 = vmatpush1.bf16.msra.mxu0 %v131
  %150 = vmatprep.subr.bf16.mxu0 0
  %151 = vmatpush1.bf16.msra.mxu0 %v132
  %152 = vmatprep.subr.bf16.mxu0 0
  %153 = vmatpush1.bf16.msra.mxu0 %v133
  %154 = vmatprep.subr.bf16.mxu0 0
  %155 = vmatpush1.bf16.msra.mxu0 %v134
  %156 = vmatprep.subr.bf16.mxu0 0
  %157 = vmatpush1.bf16.msra.mxu0 %v135
  %158 = vmatprep.subr.bf16.mxu0 0
  %159 = vmatpush1.bf16.msra.mxu0 %v136
  %160 = vmatprep.subr.bf16.mxu0 0
  %161 = vmatpush1.bf16.msra.mxu0 %v137
  %162 = vmatprep.subr.bf16.mxu0 0
  %163 = vmatpush1.bf16.msra.mxu0 0
  %164 = vmatprep.subr.bf16.mxu0 0
  %165 = vmatpush1.bf16.msra.mxu0 0
  %166 = vmatprep.subr.bf16.mxu0 0
  %167 = vmatpush1.bf16.msra.mxu0 0
  %168 = vmatprep.subr.bf16.mxu0 0
  %169 = vmatpush1.bf16.msra.mxu0 0
  %170 = vmatprep.subr.bf16.mxu0 0
  %171 = vmatpush1.bf16.msra.mxu0 0
  %172 = vmatprep.subr.bf16.mxu0 0
  %173 = vmatpush1.bf16.msra.mxu0 0
  %174 = vmatprep.subr.bf16.mxu0 0
  %175 = vmatpush1.bf16.msra.mxu0 0
  %176 = vmatprep.subr.bf16.mxu0 0
  %177 = vmatpush1.bf16.msra.mxu0 0
  %178 = vmatprep.mubr.bf16.mxu0 0
  %179 = vmatmul.mubr.bf16.gmra.mrb[0].mxu0 %v82
  %v180 = vpop.f32.mrb[0].mxu0
  %v181 = vadd.f32 0.0, %v180
  %v182 = vpop.f32.mrb[0].mxu0
  %v183 = vpop.f32.mrb[0].mxu0
  %v184 = vadd.f32 0.0, %v183
  %v185 = vpop.f32.mrb[0].mxu0
  %186 = vmatprep.mubr.bf16.mxu0 0
  %187 = vmatmul.mubr.bf16.gmra.mrb[0].mxu0 %v83
  %v188 = vpop.f32.mrb[0].mxu0
  %v189 = vadd.f32 0.0, %v188
  %v190 = vpop.f32.mrb[0].mxu0
  %v191 = vpop.f32.mrb[0].mxu0
  %v192 = vadd.f32 0.0, %v191
  %v193 = vpop.f32.mrb[0].mxu0
  %194 = vmatprep.mubr.bf16.mxu0 0
  %195 = vmatmul.mubr.bf16.gmra.mrb[0].mxu0 %v84
  %v196 = vpop.f32.mrb[0].mxu0
  %v197 = vadd.f32 0.0, %v196
  %v198 = vpop.f32.mrb[0].mxu0
  %v199 = vpop.f32.mrb[0].mxu0
  %v200 = vadd.f32 0.0, %v199
  %v201 = vpop.f32.mrb[0].mxu0
  %202 = vmatprep.mubr.bf16.mxu0 0
  %203 = vmatmul.mubr.bf16.gmra.mrb[0].mxu0 %v85
  %v204 = vpop.f32.mrb[0].mxu0
  %v205 = vadd.f32 0.0, %v204
  %v206 = vpop.f32.mrb[0].mxu0
  %v207 = vpop.f32.mrb[0].mxu0
  %v208 = vadd.f32 0.0, %v207
  %v209 = vpop.f32.mrb[0].mxu0
  %210 = vmatprep.mubr.bf16.mxu0 0
  %211 = vmatmul.mubr.bf16.gmra.mrb[0].mxu0 %v86
  %v212 = vpop.f32.mrb[0].mxu0
  %v213 = vadd.f32 0.0, %v212
  %v214 = vpop.f32.mrb[0].mxu0
  %v215 = vpop.f32.mrb[0].mxu0
  %v216 = vadd.f32 0.0, %v215
  %v217 = vpop.f32.mrb[0].mxu0
  %218 = vmatprep.mubr.bf16.mxu0 0
  %219 = vmatmul.mubr.bf16.gmra.mrb[0].mxu0 %v87
  %v220 = vpop.f32.mrb[0].mxu0
  %v221 = vadd.f32 0.0, %v220
  %v222 = vpop.f32.mrb[0].mxu0
  %v223 = vpop.f32.mrb[0].mxu0
  %v224 = vadd.f32 0.0, %v223
  %v225 = vpop.f32.mrb[0].mxu0
  %226 = vmatprep.mubr.bf16.mxu0 0
  %227 = vmatmul.mubr.bf16.gmra.mrb[0].mxu0 %v88
  %v228 = vpop.f32.mrb[0].mxu0
  %v229 = vadd.f32 0.0, %v228
  %v230 = vpop.f32.mrb[0].mxu0
  %v231 = vpop.f32.mrb[0].mxu0
  %v232 = vadd.f32 0.0, %v231
  %v233 = vpop.f32.mrb[0].mxu0
  %234 = vmatprep.mubr.bf16.mxu0 0
  %235 = vmatmul.mubr.bf16.gmra.mrb[0].mxu0 %v89
  %v236 = vpop.f32.mrb[0].mxu0
  %v237 = vadd.f32 0.0, %v236
  %v238 = vpop.f32.mrb[0].mxu0
  %v239 = vpop.f32.mrb[0].mxu0
  %v240 = vadd.f32 0.0, %v239
  %v241 = vpop.f32.mrb[0].mxu0
  %242 = vdwg.mxu0
  %v243 = vld [vmem:[%s2] sm:$0x1]
  %v245 = vlaneseq
  %v246 = vshrl.u32 %v245, 7
  %v247 = vsub.s32 0, %v246
  %v248 = vrot.slane %v243, %v247
  %v250 = vmul.f32 %v181, %v248
  %v251 = vmul.f32 %v184, %v248
  %v252 = vmul.f32 %v189, %v248
  %v253 = vmul.f32 %v192, %v248
  %v254 = vmul.f32 %v197, %v248
  %v255 = vmul.f32 %v200, %v248
  %v256 = vmul.f32 %v205, %v248
  %v257 = vmul.f32 %v208, %v248
  %v258 = vmul.f32 %v213, %v248
  %v259 = vmul.f32 %v216, %v248
  %v260 = vmul.f32 %v221, %v248
  %v261 = vmul.f32 %v224, %v248
  %v262 = vmul.f32 %v229, %v248
  %v263 = vmul.f32 %v232, %v248
  %v264 = vmul.f32 %v237, %v248
  %v265 = vmul.f32 %v240, %v248
  %v266 = vld [vmem:[%s3] sm:$0x1]
  %v268 = vlaneseq
  %v269 = vshrl.u32 %v268, 7
  %v270 = vsub.s32 0, %v269
  %v271 = vrot.slane %v266, %v270
  %v273 = vadd.f32 %v250, %v271
  %v274 = vadd.f32 %v251, %v271
  %v275 = vadd.f32 %v252, %v271
  %v276 = vadd.f32 %v253, %v271
  %v277 = vadd.f32 %v254, %v271
  %v278 = vadd.f32 %v255, %v271
  %v279 = vadd.f32 %v256, %v271
  %v280 = vadd.f32 %v257, %v271
  %v281 = vadd.f32 %v258, %v271
  %v282 = vadd.f32 %v259, %v271
  %v283 = vadd.f32 %v260, %v271
  %v284 = vadd.f32 %v261, %v271
  %v285 = vadd.f32 %v262, %v271
  %v286 = vadd.f32 %v263, %v271
  %v287 = vadd.f32 %v264, %v271
  %v288 = vadd.f32 %v265, %v271
  %v289 = vmax.f32 %v273, 0.0
  %v290 = vmax.f32 %v274, 0.0
  %v291 = vmax.f32 %v275, 0.0
  %v292 = vmax.f32 %v276, 0.0
  %v293 = vmax.f32 %v277, 0.0
  %v294 = vmax.f32 %v278, 0.0
  %v295 = vmax.f32 %v279, 0.0
  %v296 = vmax.f32 %v280, 0.0
  %v297 = vmax.f32 %v281, 0.0
  %v298 = vmax.f32 %v282, 0.0
  %v299 = vmax.f32 %v283, 0.0
  %v300 = vmax.f32 %v284, 0.0
  %v301 = vmax.f32 %v285, 0.0
  %v302 = vmax.f32 %v286, 0.0
  %v303 = vmax.f32 %v287, 0.0
  %v304 = vmax.f32 %v288, 0.0
  %v305 = vpack.c.bf16 %v290, %v289
  %v306 = vpack.c.bf16 %v292, %v291
  %v307 = vpack.c.bf16 %v294, %v293
  %v308 = vpack.c.bf16 %v296, %v295
  %v309 = vpack.c.bf16 %v298, %v297
  %v310 = vpack.c.bf16 %v300, %v299
  %v311 = vpack.c.bf16 %v302, %v301
  %v312 = vpack.c.bf16 %v304, %v303
  %v321 = vunpack.c.l.b16 %v305
  %v322 = vunpack.c.h.b16 %v305
  %v323 = vunpack.c.l.b16 %v306
  %v324 = vunpack.c.h.b16 %v306
  %v325 = vunpack.c.l.b16 %v307
  %v326 = vunpack.c.h.b16 %v307
  %v327 = vunpack.c.l.b16 %v308
  %v328 = vunpack.c.h.b16 %v308
  %v329 = vunpack.c.l.b16 %v309
  %v330 = vunpack.c.h.b16 %v309
  %v331 = vunpack.c.l.b16 %v310
  %v332 = vunpack.c.h.b16 %v310
  %v333 = vunpack.c.l.b16 %v311
  %v334 = vunpack.c.h.b16 %v311
  %v335 = vunpack.c.l.b16 %v312
  %v336 = vunpack.c.h.b16 %v312
  %v337 = vpack.c.b16 %v321, %v321
  %v338 = vpack.c.b16 %v322, %v322
  %v339 = vpack.c.b16 %v323, %v323
  %v340 = vpack.c.b16 %v324, %v324
  %v341 = vpack.c.b16 %v325, %v325
  %v342 = vpack.c.b16 %v326, %v326
  %v343 = vpack.c.b16 %v327, %v327
  %v344 = vpack.c.b16 %v328, %v328
  %v345 = vpack.c.b16 %v329, %v329
  %v346 = vpack.c.b16 %v330, %v330
  %v347 = vpack.c.b16 %v331, %v331
  %v348 = vpack.c.b16 %v332, %v332
  %v349 = vpack.c.b16 %v333, %v333
  %v350 = vpack.c.b16 %v334, %v334
  %v351 = vpack.c.b16 %v335, %v335
  %v352 = vpack.c.b16 %v336, %v336
  %369 = vst [vmem:[%s4] sm:$0xf] %v337
  %370 = vst [vmem:[%s4 + $0x4] sm:$0xf] %v338
  %371 = vst [vmem:[%s4 + $0x8] sm:$0xf] %v339
  %372 = vst [vmem:[%s4 + $0xc] sm:$0xf] %v340
  %373 = vst [vmem:[%s4 + $0x10] sm:$0xf] %v341
  %374 = vst [vmem:[%s4 + $0x14] sm:$0xf] %v342
  %375 = vst [vmem:[%s4 + $0x18] sm:$0xf] %v343
  %376 = vst [vmem:[%s4 + $0x1c] sm:$0xf] %v344
  %377 = vst [vmem:[%s4 + $0x20] sm:$0xf] %v345
  %378 = vst [vmem:[%s4 + $0x24] sm:$0xf] %v346
  %379 = vst [vmem:[%s4 + $0x28] sm:$0xf] %v347
  %380 = vst [vmem:[%s4 + $0x2c] sm:$0xf] %v348
  %381 = vst [vmem:[%s4 + $0x30] sm:$0xf] %v349
  %382 = vst [vmem:[%s4 + $0x34] sm:$0xf] %v350
  %383 = vst [vmem:[%s4 + $0x38] sm:$0xf] %v351
  %384 = vst [vmem:[%s4 + $0x3c] sm:$0xf] %v352
  // Predicated region
  $region18: #{res_forward.5} parent=0 // pred_check
    _
  $region19: #{res_forward.5} parent=0 // pred_check_branch
    %386 = sbr.rel (0) target = $region21
  $region20: #{res_forward.5} parent=0 // pred_region
    _
  $region21: #{res_forward.5} parent=0 // pred_fallthru
    _
  // Predicated region
  $region22: #{res_forward.5} parent=0 // pred_check
    _
  $region23: #{res_forward.5} parent=0 // pred_check_branch
    %388 = sbr.rel (0) target = $region25
  $region24: #{res_forward.5} parent=0 // pred_region
    _
  $region25: #{res_forward.5} parent=0 // pred_fallthru
    _

// kernel: res_forward.6
$region0: #{res_forward.6}
  #allocation0 [shape = 'u32[]', space=smem, size = 0x4, offset = 0x4, fixed_abs, tag = 'smem constant byte address 0x4 - core index']
  #allocation1 [shape = 'u32[144,128]{1,0:T(1,128)}', space=vmem, size = 0x12000, scoped, tag = 'internal scratch']
  %s0 = inlined_call_operand.vmem [shape: bf16[128,128], index: 0, kind: input, shape index: {}]
  %s1 = inlined_call_operand.vmem [shape: bf16[128,128], index: 1, kind: input, shape index: {}]
  %s2 = inlined_call_operand.vmem [shape: f32[1,128], index: 2, kind: input, shape index: {}]
  %s3 = inlined_call_operand.vmem [shape: f32[1,128], index: 3, kind: input, shape index: {}]
  %s4 = inlined_call_operand.vmem [shape: bf16[128,128], index: 4, kind: input, shape index: {}]
  %s5 = inlined_call_operand.vmem [shape: bf16[128,128], index: 5, kind: input, shape index: {}]
  %s6 = inlined_call_operand.vmem [shape: f32[1,128], index: 6, kind: input, shape index: {}]
  %s7 = inlined_call_operand.vmem [shape: f32[1,128], index: 7, kind: input, shape index: {}]
  %s8 = inlined_call_operand.vmem [shape: bf16[128,128], index: 8, kind: output, shape index: {}]
  %s9 = sld [smem:[#allocation0]]
  $region42: #{res_forward.6} parent=0
    _
  %s11 = ssub.s32 1, %s9
  %s12 = scalar_select 0, %s11, %s9
  // Predicated region
  $region2: #{res_forward.6} parent=0 // pred_check
    _
  $region3: #{res_forward.6} parent=0 // pred_check_branch
    %14 = sbr.rel (0) target = $region5
  $region4: #{res_forward.6} parent=0 // pred_region
    _
  $region5: #{res_forward.6} parent=0 // pred_fallthru
    _
  // Predicated region
  $region6: #{res_forward.6} parent=0 // pred_check
    _
  $region7: #{res_forward.6} parent=0 // pred_check_branch
    %16 = sbr.rel (0) target = $region9
  $region8: #{res_forward.6} parent=0 // pred_region
    _
  $region9: #{res_forward.6} parent=0 // pred_fallthru
    _
  // Predicated region
  $region10: #{res_forward.6} parent=0 // pred_check
    _
  $region11: #{res_forward.6} parent=0 // pred_check_branch
    %18 = sbr.rel (0) target = $region13
  $region12: #{res_forward.6} parent=0 // pred_region
    _
  $region13: #{res_forward.6} parent=0 // pred_fallthru
    _
  // Predicated region
  $region14: #{res_forward.6} parent=0 // pred_check
    _
  $region15: #{res_forward.6} parent=0 // pred_check_branch
    %20 = sbr.rel (0) target = $region17
  $region16: #{res_forward.6} parent=0 // pred_region
    _
  $region17: #{res_forward.6} parent=0 // pred_fallthru
    _
  // Predicated region
  $region18: #{res_forward.6} parent=0 // pred_check
    _
  $region19: #{res_forward.6} parent=0 // pred_check_branch
    %22 = sbr.rel (0) target = $region21
  $region20: #{res_forward.6} parent=0 // pred_region
    _
  $region21: #{res_forward.6} parent=0 // pred_fallthru
    _
  // Predicated region
  $region22: #{res_forward.6} parent=0 // pred_check
    _
  $region23: #{res_forward.6} parent=0 // pred_check_branch
    %24 = sbr.rel (0) target = $region25
  $region24: #{res_forward.6} parent=0 // pred_region
    _
  $region25: #{res_forward.6} parent=0 // pred_fallthru
    _
  // Predicated region
  $region26: #{res_forward.6} parent=0 // pred_check
    _
  $region27: #{res_forward.6} parent=0 // pred_check_branch
    %26 = sbr.rel (0) target = $region29
  $region28: #{res_forward.6} parent=0 // pred_region
    _
  $region29: #{res_forward.6} parent=0 // pred_fallthru
    _
  // Predicated region
  $region30: #{res_forward.6} parent=0 // pred_check
    _
  $region31: #{res_forward.6} parent=0 // pred_check_branch
    %28 = sbr.rel (0) target = $region33
  $region32: #{res_forward.6} parent=0 // pred_region
    _
  $region33: #{res_forward.6} parent=0 // pred_fallthru
    _
  %v30 = vld [vmem:[%s0] sm:$0xf]
  %v31 = vld [vmem:[%s0 + $0x4] sm:$0xf]
  %v32 = vld [vmem:[%s0 + $0x8] sm:$0xf]
  %v33 = vld [vmem:[%s0 + $0xc] sm:$0xf]
  %v34 = vld [vmem:[%s0 + $0x10] sm:$0xf]
  %v35 = vld [vmem:[%s0 + $0x14] sm:$0xf]
  %v36 = vld [vmem:[%s0 + $0x18] sm:$0xf]
  %v37 = vld [vmem:[%s0 + $0x1c] sm:$0xf]
  %v38 = vld [vmem:[%s0 + $0x20] sm:$0xf]
  %v39 = vld [vmem:[%s0 + $0x24] sm:$0xf]
  %v40 = vld [vmem:[%s0 + $0x28] sm:$0xf]
  %v41 = vld [vmem:[%s0 + $0x2c] sm:$0xf]
  %v42 = vld [vmem:[%s0 + $0x30] sm:$0xf]
  %v43 = vld [vmem:[%s0 + $0x34] sm:$0xf]
  %v44 = vld [vmem:[%s0 + $0x38] sm:$0xf]
  %v45 = vld [vmem:[%s0 + $0x3c] sm:$0xf]
  %v46 = vld [vmem:[%s1] sm:$0xf]
  %v47 = vld [vmem:[%s1 + $0x4] sm:$0xf]
  %v48 = vld [vmem:[%s1 + $0x8] sm:$0xf]
  %v49 = vld [vmem:[%s1 + $0xc] sm:$0xf]
  %v50 = vld [vmem:[%s1 + $0x10] sm:$0xf]
  %v51 = vld [vmem:[%s1 + $0x14] sm:$0xf]
  %v52 = vld [vmem:[%s1 + $0x18] sm:$0xf]
  %v53 = vld [vmem:[%s1 + $0x1c] sm:$0xf]
  %v54 = vld [vmem:[%s1 + $0x20] sm:$0xf]
  %v55 = vld [vmem:[%s1 + $0x24] sm:$0xf]
  %v56 = vld [vmem:[%s1 + $0x28] sm:$0xf]
  %v57 = vld [vmem:[%s1 + $0x2c] sm:$0xf]
  %v58 = vld [vmem:[%s1 + $0x30] sm:$0xf]
  %v59 = vld [vmem:[%s1 + $0x34] sm:$0xf]
  %v60 = vld [vmem:[%s1 + $0x38] sm:$0xf]
  %v61 = vld [vmem:[%s1 + $0x3c] sm:$0xf]
  %v78 = vunpack.c.l.b16 %v30
  %v79 = vunpack.c.l.b16 %v31
  %v80 = vunpack.c.l.b16 %v32
  %v81 = vunpack.c.l.b16 %v33
  %v82 = vunpack.c.l.b16 %v34
  %v83 = vunpack.c.l.b16 %v35
  %v84 = vunpack.c.l.b16 %v36
  %v85 = vunpack.c.l.b16 %v37
  %v86 = vunpack.c.l.b16 %v38
  %v87 = vunpack.c.l.b16 %v39
  %v88 = vunpack.c.l.b16 %v40
  %v89 = vunpack.c.l.b16 %v41
  %v90 = vunpack.c.l.b16 %v42
  %v91 = vunpack.c.l.b16 %v43
  %v92 = vunpack.c.l.b16 %v44
  %v93 = vunpack.c.l.b16 %v45
  %v94 = vpack.c.b16 %v79, %v78
  %v95 = vpack.c.b16 %v81, %v80
  %v96 = vpack.c.b16 %v83, %v82
  %v97 = vpack.c.b16 %v85, %v84
  %v98 = vpack.c.b16 %v87, %v86
  %v99 = vpack.c.b16 %v89, %v88
  %v100 = vpack.c.b16 %v91, %v90
  %v101 = vpack.c.b16 %v93, %v92
  %v126 = vunpack.c.l.b16 %v46
  %v127 = vunpack.c.l.b16 %v47
  %v128 = vunpack.c.l.b16 %v48
  %v129 = vunpack.c.l.b16 %v49
  %v130 = vunpack.c.l.b16 %v50
  %v131 = vunpack.c.l.b16 %v51
  %v132 = vunpack.c.l.b16 %v52
  %v133 = vunpack.c.l.b16 %v53
  %v134 = vunpack.c.l.b16 %v54
  %v135 = vunpack.c.l.b16 %v55
  %v136 = vunpack.c.l.b16 %v56
  %v137 = vunpack.c.l.b16 %v57
  %v138 = vunpack.c.l.b16 %v58
  %v139 = vunpack.c.l.b16 %v59
  %v140 = vunpack.c.l.b16 %v60
  %v141 = vunpack.c.l.b16 %v61
  %v142 = vpack.c.b16 %v127, %v126
  %v143 = vpack.c.b16 %v129, %v128
  %v144 = vpack.c.b16 %v131, %v130
  %v145 = vpack.c.b16 %v133, %v132
  %v146 = vpack.c.b16 %v135, %v134
  %v147 = vpack.c.b16 %v137, %v136
  %v148 = vpack.c.b16 %v139, %v138
  %v149 = vpack.c.b16 %v141, %v140
  %158 = vmatprep.subr.bf16.mxu0 0
  %159 = vmatpush1.bf16.msra.mxu0 %v142
  %160 = vmatprep.subr.bf16.mxu0 0
  %161 = vmatpush1.bf16.msra.mxu0 %v143
  %162 = vmatprep.subr.bf16.mxu0 0
  %163 = vmatpush1.bf16.msra.mxu0 %v144
  %164 = vmatprep.subr.bf16.mxu0 0
  %165 = vmatpush1.bf16.msra.mxu0 %v145
  %166 = vmatprep.subr.bf16.mxu0 0
  %167 = vmatpush1.bf16.msra.mxu0 %v146
  %168 = vmatprep.subr.bf16.mxu0 0
  %169 = vmatpush1.bf16.msra.mxu0 %v147
  %170 = vmatprep.subr.bf16.mxu0 0
  %171 = vmatpush1.bf16.msra.mxu0 %v148
  %172 = vmatprep.subr.bf16.mxu0 0
  %173 = vmatpush1.bf16.msra.mxu0 %v149
  %174 = vmatprep.subr.bf16.mxu0 0
  %175 = vmatpush1.bf16.msra.mxu0 0
  %176 = vmatprep.subr.bf16.mxu0 0
  %177 = vmatpush1.bf16.msra.mxu0 0
  %178 = vmatprep.subr.bf16.mxu0 0
  %179 = vmatpush1.bf16.msra.mxu0 0
  %180 = vmatprep.subr.bf16.mxu0 0
  %181 = vmatpush1.bf16.msra.mxu0 0
  %182 = vmatprep.subr.bf16.mxu0 0
  %183 = vmatpush1.bf16.msra.mxu0 0
  %184 = vmatprep.subr.bf16.mxu0 0
  %185 = vmatpush1.bf16.msra.mxu0 0
  %186 = vmatprep.subr.bf16.mxu0 0
  %187 = vmatpush1.bf16.msra.mxu0 0
  %188 = vmatprep.subr.bf16.mxu0 0
  %189 = vmatpush1.bf16.msra.mxu0 0
  %190 = vmatprep.mubr.bf16.mxu0 0
  %191 = vmatmul.mubr.bf16.gmra.mrb[0].mxu0 %v94
  %v192 = vpop.f32.mrb[0].mxu0
  %v193 = vadd.f32 0.0, %v192
  %v194 = vpop.f32.mrb[0].mxu0
  %v195 = vpop.f32.mrb[0].mxu0
  %v196 = vadd.f32 0.0, %v195
  %v197 = vpop.f32.mrb[0].mxu0
  %198 = vmatprep.mubr.bf16.mxu0 0
  %199 = vmatmul.mubr.bf16.gmra.mrb[0].mxu0 %v95
  %v200 = vpop.f32.mrb[0].mxu0
  %v201 = vadd.f32 0.0, %v200
  %v202 = vpop.f32.mrb[0].mxu0
  %v203 = vpop.f32.mrb[0].mxu0
  %v204 = vadd.f32 0.0, %v203
  %v205 = vpop.f32.mrb[0].mxu0
  %206 = vmatprep.mubr.bf16.mxu0 0
  %207 = vmatmul.mubr.bf16.gmra.mrb[0].mxu0 %v96
  %v208 = vpop.f32.mrb[0].mxu0
  %v209 = vadd.f32 0.0, %v208
  %v210 = vpop.f32.mrb[0].mxu0
  %v211 = vpop.f32.mrb[0].mxu0
  %v212 = vadd.f32 0.0, %v211
  %v213 = vpop.f32.mrb[0].mxu0
  %214 = vmatprep.mubr.bf16.mxu0 0
  %215 = vmatmul.mubr.bf16.gmra.mrb[0].mxu0 %v97
  %v216 = vpop.f32.mrb[0].mxu0
  %v217 = vadd.f32 0.0, %v216
  %v218 = vpop.f32.mrb[0].mxu0
  %v219 = vpop.f32.mrb[0].mxu0
  %v220 = vadd.f32 0.0, %v219
  %v221 = vpop.f32.mrb[0].mxu0
  %222 = vmatprep.mubr.bf16.mxu0 0
  %223 = vmatmul.mubr.bf16.gmra.mrb[0].mxu0 %v98
  %v224 = vpop.f32.mrb[0].mxu0
  %v225 = vadd.f32 0.0, %v224
  %v226 = vpop.f32.mrb[0].mxu0
  %v227 = vpop.f32.mrb[0].mxu0
  %v228 = vadd.f32 0.0, %v227
  %v229 = vpop.f32.mrb[0].mxu0
  %230 = vmatprep.mubr.bf16.mxu0 0
  %231 = vmatmul.mubr.bf16.gmra.mrb[0].mxu0 %v99
  %v232 = vpop.f32.mrb[0].mxu0
  %v233 = vadd.f32 0.0, %v232
  %v234 = vpop.f32.mrb[0].mxu0
  %v235 = vpop.f32.mrb[0].mxu0
  %v236 = vadd.f32 0.0, %v235
  %v237 = vpop.f32.mrb[0].mxu0
  %238 = vmatprep.mubr.bf16.mxu0 0
  %239 = vmatmul.mubr.bf16.gmra.mrb[0].mxu0 %v100
  %v240 = vpop.f32.mrb[0].mxu0
  %v241 = vadd.f32 0.0, %v240
  %v242 = vpop.f32.mrb[0].mxu0
  %v243 = vpop.f32.mrb[0].mxu0
  %v244 = vadd.f32 0.0, %v243
  %v245 = vpop.f32.mrb[0].mxu0
  %246 = vmatprep.mubr.bf16.mxu0 0
  %247 = vmatmul.mubr.bf16.gmra.mrb[0].mxu0 %v101
  %v248 = vpop.f32.mrb[0].mxu0
  %v249 = vadd.f32 0.0, %v248
  %v250 = vpop.f32.mrb[0].mxu0
  %v251 = vpop.f32.mrb[0].mxu0
  %v252 = vadd.f32 0.0, %v251
  %v253 = vpop.f32.mrb[0].mxu0
  %254 = vdwg.mxu0
  %v255 = vld [vmem:[%s4] sm:$0xf]
  %v256 = vld [vmem:[%s4 + $0x4] sm:$0xf]
  %v257 = vld [vmem:[%s4 + $0x8] sm:$0xf]
  %v258 = vld [vmem:[%s4 + $0xc] sm:$0xf]
  %v259 = vld [vmem:[%s4 + $0x10] sm:$0xf]
  %v260 = vld [vmem:[%s4 + $0x14] sm:$0xf]
  %v261 = vld [vmem:[%s4 + $0x18] sm:$0xf]
  %v262 = vld [vmem:[%s4 + $0x1c] sm:$0xf]
  %v263 = vld [vmem:[%s4 + $0x20] sm:$0xf]
  %v264 = vld [vmem:[%s4 + $0x24] sm:$0xf]
  %v265 = vld [vmem:[%s4 + $0x28] sm:$0xf]
  %v266 = vld [vmem:[%s4 + $0x2c] sm:$0xf]
  %v267 = vld [vmem:[%s4 + $0x30] sm:$0xf]
  %v268 = vld [vmem:[%s4 + $0x34] sm:$0xf]
  %v269 = vld [vmem:[%s4 + $0x38] sm:$0xf]
  %v270 = vld [vmem:[%s4 + $0x3c] sm:$0xf]
  %v271 = vld [vmem:[%s5] sm:$0xf]
  %v272 = vld [vmem:[%s5 + $0x4] sm:$0xf]
  %v273 = vld [vmem:[%s5 + $0x8] sm:$0xf]
  %v274 = vld [vmem:[%s5 + $0xc] sm:$0xf]
  %v275 = vld [vmem:[%s5 + $0x10] sm:$0xf]
  %v276 = vld [vmem:[%s5 + $0x14] sm:$0xf]
  %v277 = vld [vmem:[%s5 + $0x18] sm:$0xf]
  %v278 = vld [vmem:[%s5 + $0x1c] sm:$0xf]
  %v279 = vld [vmem:[%s5 + $0x20] sm:$0xf]
  %v280 = vld [vmem:[%s5 + $0x24] sm:$0xf]
  %v281 = vld [vmem:[%s5 + $0x28] sm:$0xf]
  %v282 = vld [vmem:[%s5 + $0x2c] sm:$0xf]
  %v283 = vld [vmem:[%s5 + $0x30] sm:$0xf]
  %v284 = vld [vmem:[%s5 + $0x34] sm:$0xf]
  %v285 = vld [vmem:[%s5 + $0x38] sm:$0xf]
  %v286 = vld [vmem:[%s5 + $0x3c] sm:$0xf]
  %v303 = vunpack.c.l.b16 %v255
  %v304 = vunpack.c.l.b16 %v256
  %v305 = vunpack.c.l.b16 %v257
  %v306 = vunpack.c.l.b16 %v258
  %v307 = vunpack.c.l.b16 %v259
  %v308 = vunpack.c.l.b16 %v260
  %v309 = vunpack.c.l.b16 %v261
  %v310 = vunpack.c.l.b16 %v262
  %v311 = vunpack.c.l.b16 %v263
  %v312 = vunpack.c.l.b16 %v264
  %v313 = vunpack.c.l.b16 %v265
  %v314 = vunpack.c.l.b16 %v266
  %v315 = vunpack.c.l.b16 %v267
  %v316 = vunpack.c.l.b16 %v268
  %v317 = vunpack.c.l.b16 %v269
  %v318 = vunpack.c.l.b16 %v270
  %v319 = vpack.c.b16 %v304, %v303
  %v320 = vpack.c.b16 %v306, %v305
  %v321 = vpack.c.b16 %v308, %v307
  %v322 = vpack.c.b16 %v310, %v309
  %v323 = vpack.c.b16 %v312, %v311
  %v324 = vpack.c.b16 %v314, %v313
  %v325 = vpack.c.b16 %v316, %v315
  %v326 = vpack.c.b16 %v318, %v317
  %v351 = vunpack.c.l.b16 %v271
  %v352 = vunpack.c.l.b16 %v272
  %v353 = vunpack.c.l.b16 %v273
  %v354 = vunpack.c.l.b16 %v274
  %v355 = vunpack.c.l.b16 %v275
  %v356 = vunpack.c.l.b16 %v276
  %v357 = vunpack.c.l.b16 %v277
  %v358 = vunpack.c.l.b16 %v278
  %v359 = vunpack.c.l.b16 %v279
  %v360 = vunpack.c.l.b16 %v280
  %v361 = vunpack.c.l.b16 %v281
  %v362 = vunpack.c.l.b16 %v282
  %v363 = vunpack.c.l.b16 %v283
  %v364 = vunpack.c.l.b16 %v284
  %v365 = vunpack.c.l.b16 %v285
  %v366 = vunpack.c.l.b16 %v286
  %v367 = vpack.c.b16 %v352, %v351
  %v368 = vpack.c.b16 %v354, %v353
  %v369 = vpack.c.b16 %v356, %v355
  %v370 = vpack.c.b16 %v358, %v357
  %v371 = vpack.c.b16 %v360, %v359
  %v372 = vpack.c.b16 %v362, %v361
  %v373 = vpack.c.b16 %v364, %v363
  %v374 = vpack.c.b16 %v366, %v365
  %383 = vmatprep.subr.bf16.mxu0 0
  %384 = vmatpush1.bf16.msra.mxu0 %v367
  %385 = vmatprep.subr.bf16.mxu0 0
  %386 = vmatpush1.bf16.msra.mxu0 %v368
  %387 = vmatprep.subr.bf16.mxu0 0
  %388 = vmatpush1.bf16.msra.mxu0 %v369
  %389 = vmatprep.subr.bf16.mxu0 0
  %390 = vmatpush1.bf16.msra.mxu0 %v370
  %391 = vmatprep.subr.bf16.mxu0 0
  %392 = vmatpush1.bf16.msra.mxu0 %v371
  %393 = vmatprep.subr.bf16.mxu0 0
  %394 = vmatpush1.bf16.msra.mxu0 %v372
  %395 = vmatprep.subr.bf16.mxu0 0
  %396 = vmatpush1.bf16.msra.mxu0 %v373
  %397 = vmatprep.subr.bf16.mxu0 0
  %398 = vmatpush1.bf16.msra.mxu0 %v374
  %399 = vmatprep.subr.bf16.mxu0 0
  %400 = vmatpush1.bf16.msra.mxu0 0
  %401 = vmatprep.subr.bf16.mxu0 0
  %402 = vmatpush1.bf16.msra.mxu0 0
  %403 = vmatprep.subr.bf16.mxu0 0
  %404 = vmatpush1.bf16.msra.mxu0 0
  %405 = vmatprep.subr.bf16.mxu0 0
  %406 = vmatpush1.bf16.msra.mxu0 0
  %407 = vmatprep.subr.bf16.mxu0 0
  %408 = vmatpush1.bf16.msra.mxu0 0
  %409 = vmatprep.subr.bf16.mxu0 0
  %410 = vmatpush1.bf16.msra.mxu0 0
  %411 = vmatprep.subr.bf16.mxu0 0
  %412 = vmatpush1.bf16.msra.mxu0 0
  %413 = vmatprep.subr.bf16.mxu0 0
  %414 = vmatpush1.bf16.msra.mxu0 0
  %415 = vmatprep.mubr.bf16.mxu0 0
  %416 = vmatmul.mubr.bf16.gmra.mrb[0].mxu0 %v319
  %v417 = vpop.f32.mrb[0].mxu0
  %v418 = vadd.f32 0.0, %v417
  %v419 = vpop.f32.mrb[0].mxu0
  %v420 = vpop.f32.mrb[0].mxu0
  %v421 = vadd.f32 0.0, %v420
  %v422 = vpop.f32.mrb[0].mxu0
  %423 = vmatprep.mubr.bf16.mxu0 0
  %424 = vmatmul.mubr.bf16.gmra.mrb[0].mxu0 %v320
  %v425 = vpop.f32.mrb[0].mxu0
  %v426 = vadd.f32 0.0, %v425
  %v427 = vpop.f32.mrb[0].mxu0
  %v428 = vpop.f32.mrb[0].mxu0
  %v429 = vadd.f32 0.0, %v428
  %v430 = vpop.f32.mrb[0].mxu0
  %431 = vmatprep.mubr.bf16.mxu0 0
  %432 = vmatmul.mubr.bf16.gmra.mrb[0].mxu0 %v321
  %v433 = vpop.f32.mrb[0].mxu0
  %v434 = vadd.f32 0.0, %v433
  %v435 = vpop.f32.mrb[0].mxu0
  %v436 = vpop.f32.mrb[0].mxu0
  %v437 = vadd.f32 0.0, %v436
  %v438 = vpop.f32.mrb[0].mxu0
  %439 = vmatprep.mubr.bf16.mxu0 0
  %440 = vmatmul.mubr.bf16.gmra.mrb[0].mxu0 %v322
  %v441 = vpop.f32.mrb[0].mxu0
  %v442 = vadd.f32 0.0, %v441
  %v443 = vpop.f32.mrb[0].mxu0
  %v444 = vpop.f32.mrb[0].mxu0
  %v445 = vadd.f32 0.0, %v444
  %v446 = vpop.f32.mrb[0].mxu0
  %447 = vmatprep.mubr.bf16.mxu0 0
  %448 = vmatmul.mubr.bf16.gmra.mrb[0].mxu0 %v323
  %v449 = vpop.f32.mrb[0].mxu0
  %v450 = vadd.f32 0.0, %v449
  %v451 = vpop.f32.mrb[0].mxu0
  %v452 = vpop.f32.mrb[0].mxu0
  %v453 = vadd.f32 0.0, %v452
  %v454 = vpop.f32.mrb[0].mxu0
  %455 = vmatprep.mubr.bf16.mxu0 0
  %456 = vmatmul.mubr.bf16.gmra.mrb[0].mxu0 %v324
  %v457 = vpop.f32.mrb[0].mxu0
  %v458 = vadd.f32 0.0, %v457
  %v459 = vpop.f32.mrb[0].mxu0
  %v460 = vpop.f32.mrb[0].mxu0
  %v461 = vadd.f32 0.0, %v460
  %v462 = vpop.f32.mrb[0].mxu0
  %463 = vmatprep.mubr.bf16.mxu0 0
  %464 = vmatmul.mubr.bf16.gmra.mrb[0].mxu0 %v325
  %v465 = vpop.f32.mrb[0].mxu0
  %v466 = vadd.f32 0.0, %v465
  %v467 = vpop.f32.mrb[0].mxu0
  %v468 = vpop.f32.mrb[0].mxu0
  %v469 = vadd.f32 0.0, %v468
  %v470 = vpop.f32.mrb[0].mxu0
  %471 = vmatprep.mubr.bf16.mxu0 0
  %472 = vmatmul.mubr.bf16.gmra.mrb[0].mxu0 %v326
  %v473 = vpop.f32.mrb[0].mxu0
  %v474 = vadd.f32 0.0, %v473
  %v475 = vpop.f32.mrb[0].mxu0
  %v476 = vpop.f32.mrb[0].mxu0
  %v477 = vadd.f32 0.0, %v476
  %v478 = vpop.f32.mrb[0].mxu0
  %479 = vdwg.mxu0
  %v480 = vld [vmem:[%s2] sm:$0x1]
  %v482 = vlaneseq
  %v483 = vshrl.u32 %v482, 7
  %v484 = vsub.s32 0, %v483
  %v485 = vrot.slane %v480, %v484
  %v487 = vmul.f32 %v193, %v485
  %v488 = vmul.f32 %v196, %v485
  %v489 = vmul.f32 %v201, %v485
  %v490 = vmul.f32 %v204, %v485
  %v491 = vmul.f32 %v209, %v485
  %v492 = vmul.f32 %v212, %v485
  %v493 = vmul.f32 %v217, %v485
  %v494 = vmul.f32 %v220, %v485
  %v495 = vmul.f32 %v225, %v485
  %v496 = vmul.f32 %v228, %v485
  %v497 = vmul.f32 %v233, %v485
  %v498 = vmul.f32 %v236, %v485
  %v499 = vmul.f32 %v241, %v485
  %v500 = vmul.f32 %v244, %v485
  %v501 = vmul.f32 %v249, %v485
  %v502 = vmul.f32 %v252, %v485
  %v503 = vld [vmem:[%s3] sm:$0x1]
  %v505 = vlaneseq
  %v506 = vshrl.u32 %v505, 7
  %v507 = vsub.s32 0, %v506
  %v508 = vrot.slane %v503, %v507
  %v510 = vadd.f32 %v487, %v508
  %v511 = vadd.f32 %v488, %v508
  %v512 = vadd.f32 %v489, %v508
  %v513 = vadd.f32 %v490, %v508
  %v514 = vadd.f32 %v491, %v508
  %v515 = vadd.f32 %v492, %v508
  %v516 = vadd.f32 %v493, %v508
  %v517 = vadd.f32 %v494, %v508
  %v518 = vadd.f32 %v495, %v508
  %v519 = vadd.f32 %v496, %v508
  %v520 = vadd.f32 %v497, %v508
  %v521 = vadd.f32 %v498, %v508
  %v522 = vadd.f32 %v499, %v508
  %v523 = vadd.f32 %v500, %v508
  %v524 = vadd.f32 %v501, %v508
  %v525 = vadd.f32 %v502, %v508
  %v526 = vld [vmem:[%s6] sm:$0x1]
  %v528 = vlaneseq
  %v529 = vshrl.u32 %v528, 7
  %v530 = vsub.s32 0, %v529
  %v531 = vrot.slane %v526, %v530
  %v533 = vmul.f32 %v418, %v531
  %v534 = vmul.f32 %v421, %v531
  %v535 = vmul.f32 %v426, %v531
  %v536 = vmul.f32 %v429, %v531
  %v537 = vmul.f32 %v434, %v531
  %v538 = vmul.f32 %v437, %v531
  %v539 = vmul.f32 %v442, %v531
  %v540 = vmul.f32 %v445, %v531
  %v541 = vmul.f32 %v450, %v531
  %v542 = vmul.f32 %v453, %v531
  %v543 = vmul.f32 %v458, %v531
  %v544 = vmul.f32 %v461, %v531
  %v545 = vmul.f32 %v466, %v531
  %v546 = vmul.f32 %v469, %v531
  %v547 = vmul.f32 %v474, %v531
  %v548 = vmul.f32 %v477, %v531
  %v549 = vadd.f32 %v510, %v533
  %v550 = vadd.f32 %v511, %v534
  %v551 = vadd.f32 %v512, %v535
  %v552 = vadd.f32 %v513, %v536
  %v553 = vadd.f32 %v514, %v537
  %v554 = vadd.f32 %v515, %v538
  %v555 = vadd.f32 %v516, %v539
  %v556 = vadd.f32 %v517, %v540
  %v557 = vadd.f32 %v518, %v541
  %v558 = vadd.f32 %v519, %v542
  %v559 = vadd.f32 %v520, %v543
  %v560 = vadd.f32 %v521, %v544
  %v561 = vadd.f32 %v522, %v545
  %v562 = vadd.f32 %v523, %v546
  %v563 = vadd.f32 %v524, %v547
  %v564 = vadd.f32 %v525, %v548
  %v565 = vld [vmem:[%s7] sm:$0x1]
  %v567 = vlaneseq
  %v568 = vshrl.u32 %v567, 7
  %v569 = vsub.s32 0, %v568
  %v570 = vrot.slane %v565, %v569
  %v572 = vadd.f32 %v549, %v570
  %v573 = vadd.f32 %v550, %v570
  %v574 = vadd.f32 %v551, %v570
  %v575 = vadd.f32 %v552, %v570
  %v576 = vadd.f32 %v553, %v570
  %v577 = vadd.f32 %v554, %v570
  %v578 = vadd.f32 %v555, %v570
  %v579 = vadd.f32 %v556, %v570
  %v580 = vadd.f32 %v557, %v570
  %v581 = vadd.f32 %v558, %v570
  %v582 = vadd.f32 %v559, %v570
  %v583 = vadd.f32 %v560, %v570
  %v584 = vadd.f32 %v561, %v570
  %v585 = vadd.f32 %v562, %v570
  %v586 = vadd.f32 %v563, %v570
  %v587 = vadd.f32 %v564, %v570
  %v588 = vmax.f32 %v572, 0.0
  %v589 = vmax.f32 %v573, 0.0
  %v590 = vmax.f32 %v574, 0.0
  %v591 = vmax.f32 %v575, 0.0
  %v592 = vmax.f32 %v576, 0.0
  %v593 = vmax.f32 %v577, 0.0
  %v594 = vmax.f32 %v578, 0.0
  %v595 = vmax.f32 %v579, 0.0
  %v596 = vmax.f32 %v580, 0.0
  %v597 = vmax.f32 %v581, 0.0
  %v598 = vmax.f32 %v582, 0.0
  %v599 = vmax.f32 %v583, 0.0
  %v600 = vmax.f32 %v584, 0.0
  %v601 = vmax.f32 %v585, 0.0
  %v602 = vmax.f32 %v586, 0.0
  %v603 = vmax.f32 %v587, 0.0
  %v604 = vpack.c.bf16 %v589, %v588
  %v605 = vpack.c.bf16 %v591, %v590
  %v606 = vpack.c.bf16 %v593, %v592
  %v607 = vpack.c.bf16 %v595, %v594
  %v608 = vpack.c.bf16 %v597, %v596
  %v609 = vpack.c.bf16 %v599, %v598
  %v610 = vpack.c.bf16 %v601, %v600
  %v611 = vpack.c.bf16 %v603, %v602
  %v620 = vunpack.c.l.b16 %v604
  %v621 = vunpack.c.h.b16 %v604
  %v622 = vunpack.c.l.b16 %v605
  %v623 = vunpack.c.h.b16 %v605
  %v624 = vunpack.c.l.b16 %v606
  %v625 = vunpack.c.h.b16 %v606
  %v626 = vunpack.c.l.b16 %v607
  %v627 = vunpack.c.h.b16 %v607
  %v628 = vunpack.c.l.b16 %v608
  %v629 = vunpack.c.h.b16 %v608
  %v630 = vunpack.c.l.b16 %v609
  %v631 = vunpack.c.h.b16 %v609
  %v632 = vunpack.c.l.b16 %v610
  %v633 = vunpack.c.h.b16 %v610
  %v634 = vunpack.c.l.b16 %v611
  %v635 = vunpack.c.h.b16 %v611
  %v636 = vpack.c.b16 %v620, %v620
  %v637 = vpack.c.b16 %v621, %v621
  %v638 = vpack.c.b16 %v622, %v622
  %v639 = vpack.c.b16 %v623, %v623
  %v640 = vpack.c.b16 %v624, %v624
  %v641 = vpack.c.b16 %v625, %v625
  %v642 = vpack.c.b16 %v626, %v626
  %v643 = vpack.c.b16 %v627, %v627
  %v644 = vpack.c.b16 %v628, %v628
  %v645 = vpack.c.b16 %v629, %v629
  %v646 = vpack.c.b16 %v630, %v630
  %v647 = vpack.c.b16 %v631, %v631
  %v648 = vpack.c.b16 %v632, %v632
  %v649 = vpack.c.b16 %v633, %v633
  %v650 = vpack.c.b16 %v634, %v634
  %v651 = vpack.c.b16 %v635, %v635
  %668 = vst [vmem:[%s8] sm:$0xf] %v636
  %669 = vst [vmem:[%s8 + $0x4] sm:$0xf] %v637
  %670 = vst [vmem:[%s8 + $0x8] sm:$0xf] %v638
  %671 = vst [vmem:[%s8 + $0xc] sm:$0xf] %v639
  %672 = vst [vmem:[%s8 + $0x10] sm:$0xf] %v640
  %673 = vst [vmem:[%s8 + $0x14] sm:$0xf] %v641
  %674 = vst [vmem:[%s8 + $0x18] sm:$0xf] %v642
  %675 = vst [vmem:[%s8 + $0x1c] sm:$0xf] %v643
  %676 = vst [vmem:[%s8 + $0x20] sm:$0xf] %v644
  %677 = vst [vmem:[%s8 + $0x24] sm:$0xf] %v645
  %678 = vst [vmem:[%s8 + $0x28] sm:$0xf] %v646
  %679 = vst [vmem:[%s8 + $0x2c] sm:$0xf] %v647
  %680 = vst [vmem:[%s8 + $0x30] sm:$0xf] %v648
  %681 = vst [vmem:[%s8 + $0x34] sm:$0xf] %v649
  %682 = vst [vmem:[%s8 + $0x38] sm:$0xf] %v650
  %683 = vst [vmem:[%s8 + $0x3c] sm:$0xf] %v651
  // Predicated region
  $region34: #{res_forward.6} parent=0 // pred_check
    _
  $region35: #{res_forward.6} parent=0 // pred_check_branch
    %685 = sbr.rel (0) target = $region37
  $region36: #{res_forward.6} parent=0 // pred_region
    _
  $region37: #{res_forward.6} parent=0 // pred_fallthru
    _
  // Predicated region
  $region38: #{res_forward.6} parent=0 // pred_check
    _
  $region39: #{res_forward.6} parent=0 // pred_check_branch
    %687 = sbr.rel (0) target = $region41
  $region40: #{res_forward.6} parent=0 // pred_region
    _
  $region41: #{res_forward.6} parent=0 // pred_fallthru
    _

// kernel: res_forward.7
$region0: #{res_forward.7}
  #allocation0 [shape = 'u32[]', space=smem, size = 0x4, offset = 0x4, fixed_abs, tag = 'smem constant byte address 0x4 - core index']
  #allocation1 [shape = 'u32[144,128]{1,0:T(1,128)}', space=vmem, size = 0x12000, scoped, tag = 'internal scratch']
  %s0 = inlined_call_operand.vmem [shape: bf16[32,128], index: 0, kind: input, shape index: {}]
  %s1 = inlined_call_operand.vmem [shape: bf16[128,128], index: 1, kind: input, shape index: {}]
  %s2 = inlined_call_operand.vmem [shape: f32[1,128], index: 2, kind: input, shape index: {}]
  %s3 = inlined_call_operand.vmem [shape: f32[1,128], index: 3, kind: input, shape index: {}]
  %s4 = inlined_call_operand.vmem [shape: bf16[32,128], index: 4, kind: output, shape index: {}]
  %s5 = sld [smem:[#allocation0]]
  $region26: #{res_forward.7} parent=0
    _
  %s7 = ssub.s32 1, %s5
  %s8 = scalar_select 0, %s7, %s5
  // Predicated region
  $region2: #{res_forward.7} parent=0 // pred_check
    _
  $region3: #{res_forward.7} parent=0 // pred_check_branch
    %10 = sbr.rel (0) target = $region5
  $region4: #{res_forward.7} parent=0 // pred_region
    _
  $region5: #{res_forward.7} parent=0 // pred_fallthru
    _
  // Predicated region
  $region6: #{res_forward.7} parent=0 // pred_check
    _
  $region7: #{res_forward.7} parent=0 // pred_check_branch
    %12 = sbr.rel (0) target = $region9
  $region8: #{res_forward.7} parent=0 // pred_region
    _
  $region9: #{res_forward.7} parent=0 // pred_fallthru
    _
  // Predicated region
  $region10: #{res_forward.7} parent=0 // pred_check
    _
  $region11: #{res_forward.7} parent=0 // pred_check_branch
    %14 = sbr.rel (0) target = $region13
  $region12: #{res_forward.7} parent=0 // pred_region
    _
  $region13: #{res_forward.7} parent=0 // pred_fallthru
    _
  // Predicated region
  $region14: #{res_forward.7} parent=0 // pred_check
    _
  $region15: #{res_forward.7} parent=0 // pred_check_branch
    %16 = sbr.rel (0) target = $region17
  $region16: #{res_forward.7} parent=0 // pred_region
    _
  $region17: #{res_forward.7} parent=0 // pred_fallthru
    _
  %v18 = vld [vmem:[%s0] sm:$0xf]
  %v19 = vld [vmem:[%s0 + $0x4] sm:$0xf]
  %v20 = vld [vmem:[%s0 + $0x8] sm:$0xf]
  %v21 = vld [vmem:[%s0 + $0xc] sm:$0xf]
  %v22 = vld [vmem:[%s1] sm:$0xf]
  %v23 = vld [vmem:[%s1 + $0x4] sm:$0xf]
  %v24 = vld [vmem:[%s1 + $0x8] sm:$0xf]
  %v25 = vld [vmem:[%s1 + $0xc] sm:$0xf]
  %v26 = vld [vmem:[%s1 + $0x10] sm:$0xf]
  %v27 = vld [vmem:[%s1 + $0x14] sm:$0xf]
  %v28 = vld [vmem:[%s1 + $0x18] sm:$0xf]
  %v29 = vld [vmem:[%s1 + $0x1c] sm:$0xf]
  %v30 = vld [vmem:[%s1 + $0x20] sm:$0xf]
  %v31 = vld [vmem:[%s1 + $0x24] sm:$0xf]
  %v32 = vld [vmem:[%s1 + $0x28] sm:$0xf]
  %v33 = vld [vmem:[%s1 + $0x2c] sm:$0xf]
  %v34 = vld [vmem:[%s1 + $0x30] sm:$0xf]
  %v35 = vld [vmem:[%s1 + $0x34] sm:$0xf]
  %v36 = vld [vmem:[%s1 + $0x38] sm:$0xf]
  %v37 = vld [vmem:[%s1 + $0x3c] sm:$0xf]
  %v42 = vunpack.c.l.b16 %v18
  %v43 = vunpack.c.l.b16 %v19
  %v44 = vunpack.c.l.b16 %v20
  %v45 = vunpack.c.l.b16 %v21
  %v46 = vpack.c.b16 %v43, %v42
  %v47 = vpack.c.b16 %v45, %v44
  %v66 = vunpack.c.l.b16 %v22
  %v67 = vunpack.c.l.b16 %v23
  %v68 = vunpack.c.l.b16 %v24
  %v69 = vunpack.c.l.b16 %v25
  %v70 = vunpack.c.l.b16 %v26
  %v71 = vunpack.c.l.b16 %v27
  %v72 = vunpack.c.l.b16 %v28
  %v73 = vunpack.c.l.b16 %v29
  %v74 = vunpack.c.l.b16 %v30
  %v75 = vunpack.c.l.b16 %v31
  %v76 = vunpack.c.l.b16 %v32
  %v77 = vunpack.c.l.b16 %v33
  %v78 = vunpack.c.l.b16 %v34
  %v79 = vunpack.c.l.b16 %v35
  %v80 = vunpack.c.l.b16 %v36
  %v81 = vunpack.c.l.b16 %v37
  %v82 = vpack.c.b16 %v67, %v66
  %v83 = vpack.c.b16 %v69, %v68
  %v84 = vpack.c.b16 %v71, %v70
  %v85 = vpack.c.b16 %v73, %v72
  %v86 = vpack.c.b16 %v75, %v74
  %v87 = vpack.c.b16 %v77, %v76
  %v88 = vpack.c.b16 %v79, %v78
  %v89 = vpack.c.b16 %v81, %v80
  %98 = vmatprep.subr.bf16.mxu0 0
  %99 = vmatpush1.bf16.msra.mxu0 %v82
  %100 = vmatprep.subr.bf16.mxu0 0
  %101 = vmatpush1.bf16.msra.mxu0 %v83
  %102 = vmatprep.subr.bf16.mxu0 0
  %103 = vmatpush1.bf16.msra.mxu0 %v84
  %104 = vmatprep.subr.bf16.mxu0 0
  %105 = vmatpush1.bf16.msra.mxu0 %v85
  %106 = vmatprep.subr.bf16.mxu0 0
  %107 = vmatpush1.bf16.msra.mxu0 %v86
  %108 = vmatprep.subr.bf16.mxu0 0
  %109 = vmatpush1.bf16.msra.mxu0 %v87
  %110 = vmatprep.subr.bf16.mxu0 0
  %111 = vmatpush1.bf16.msra.mxu0 %v88
  %112 = vmatprep.subr.bf16.mxu0 0
  %113 = vmatpush1.bf16.msra.mxu0 %v89
  %114 = vmatprep.subr.bf16.mxu0 0
  %115 = vmatpush1.bf16.msra.mxu0 0
  %116 = vmatprep.subr.bf16.mxu0 0
  %117 = vmatpush1.bf16.msra.mxu0 0
  %118 = vmatprep.subr.bf16.mxu0 0
  %119 = vmatpush1.bf16.msra.mxu0 0
  %120 = vmatprep.subr.bf16.mxu0 0
  %121 = vmatpush1.bf16.msra.mxu0 0
  %122 = vmatprep.subr.bf16.mxu0 0
  %123 = vmatpush1.bf16.msra.mxu0 0
  %124 = vmatprep.subr.bf16.mxu0 0
  %125 = vmatpush1.bf16.msra.mxu0 0
  %126 = vmatprep.subr.bf16.mxu0 0
  %127 = vmatpush1.bf16.msra.mxu0 0
  %128 = vmatprep.subr.bf16.mxu0 0
  %129 = vmatpush1.bf16.msra.mxu0 0
  %130 = vmatprep.mubr.bf16.mxu0 0
  %131 = vmatmul.mubr.bf16.gmra.mrb[0].mxu0 %v46
  %v132 = vpop.f32.mrb[0].mxu0
  %v133 = vadd.f32 0.0, %v132
  %v134 = vpop.f32.mrb[0].mxu0
  %v135 = vpop.f32.mrb[0].mxu0
  %v136 = vadd.f32 0.0, %v135
  %v137 = vpop.f32.mrb[0].mxu0
  %138 = vmatprep.mubr.bf16.mxu0 0
  %139 = vmatmul.mubr.bf16.gmra.mrb[0].mxu0 %v47
  %v140 = vpop.f32.mrb[0].mxu0
  %v141 = vadd.f32 0.0, %v140
  %v142 = vpop.f32.mrb[0].mxu0
  %v143 = vpop.f32.mrb[0].mxu0
  %v144 = vadd.f32 0.0, %v143
  %v145 = vpop.f32.mrb[0].mxu0
  %146 = vdwg.mxu0
  %v147 = vld [vmem:[%s2] sm:$0x1]
  %v149 = vlaneseq
  %v150 = vshrl.u32 %v149, 7
  %v151 = vsub.s32 0, %v150
  %v152 = vrot.slane %v147, %v151
  %v154 = vmul.f32 %v133, %v152
  %v155 = vmul.f32 %v136, %v152
  %v156 = vmul.f32 %v141, %v152
  %v157 = vmul.f32 %v144, %v152
  %v158 = vld [vmem:[%s3] sm:$0x1]
  %v160 = vlaneseq
  %v161 = vshrl.u32 %v160, 7
  %v162 = vsub.s32 0, %v161
  %v163 = vrot.slane %v158, %v162
  %v165 = vadd.f32 %v154, %v163
  %v166 = vadd.f32 %v155, %v163
  %v167 = vadd.f32 %v156, %v163
  %v168 = vadd.f32 %v157, %v163
  %v169 = vmax.f32 %v165, 0.0
  %v170 = vmax.f32 %v166, 0.0
  %v171 = vmax.f32 %v167, 0.0
  %v172 = vmax.f32 %v168, 0.0
  %v173 = vpack.c.bf16 %v170, %v169
  %v174 = vpack.c.bf16 %v172, %v171
  %v177 = vunpack.c.l.b16 %v173
  %v178 = vunpack.c.h.b16 %v173
  %v179 = vunpack.c.l.b16 %v174
  %v180 = vunpack.c.h.b16 %v174
  %v181 = vpack.c.b16 %v177, %v177
  %v182 = vpack.c.b16 %v178, %v178
  %v183 = vpack.c.b16 %v179, %v179
  %v184 = vpack.c.b16 %v180, %v180
  %189 = vst [vmem:[%s4] sm:$0xf] %v181
  %190 = vst [vmem:[%s4 + $0x4] sm:$0xf] %v182
  %191 = vst [vmem:[%s4 + $0x8] sm:$0xf] %v183
  %192 = vst [vmem:[%s4 + $0xc] sm:$0xf] %v184
  // Predicated region
  $region18: #{res_forward.7} parent=0 // pred_check
    _
  $region19: #{res_forward.7} parent=0 // pred_check_branch
    %194 = sbr.rel (0) target = $region21
  $region20: #{res_forward.7} parent=0 // pred_region
    _
  $region21: #{res_forward.7} parent=0 // pred_fallthru
    _
  // Predicated region
  $region22: #{res_forward.7} parent=0 // pred_check
    _
  $region23: #{res_forward.7} parent=0 // pred_check_branch
    %196 = sbr.rel (0) target = $region25
  $region24: #{res_forward.7} parent=0 // pred_region
    _
  $region25: #{res_forward.7} parent=0 // pred_fallthru
    _

// kernel: res_forward.9
$region0: #{res_forward.9}
  #allocation0 [shape = 'u32[]', space=smem, size = 0x4, offset = 0x4, fixed_abs, tag = 'smem constant byte address 0x4 - core index']
  #allocation1 [shape = 'u32[144,128]{1,0:T(1,128)}', space=vmem, size = 0x12000, scoped, tag = 'internal scratch']
  #allocation2 [shape = 'f32[1,1]{1,0:T(1,128)S(1)}', space=vmem, size = 0x200, scoped, tag = 'scoped memory for res_forward.9']
  %s0 = inlined_call_operand.vmem [shape: f32[8,256], index: 0, kind: input, shape index: {}]
  %s1 = inlined_call_operand.vmem [shape: f32[1,256], index: 1, kind: input, shape index: {}]
  %s2 = inlined_call_operand.<no memory space> [shape: f32[1,1], index: 2, kind: input, shape index: {}]
  %s3 = inlined_call_operand.vmem [shape: f32[8,1], index: 3, kind: output, shape index: {}]
  %s4 = sld [smem:[#allocation0]]
  $region22: #{res_forward.9} parent=0
    _
  %s6 = ssub.s32 1, %s4
  %s7 = scalar_select 0, %s6, %s4
  %v8 = vstv %s2
  %9 = vst [vmem:[#allocation2] sm:$0x1] %v8
  // Predicated region
  $region2: #{res_forward.9} parent=0 // pred_check
    _
  $region3: #{res_forward.9} parent=0 // pred_check_branch
    %11 = sbr.rel (0) target = $region5
  $region4: #{res_forward.9} parent=0 // pred_region
    _
  $region5: #{res_forward.9} parent=0 // pred_fallthru
    _
  // Predicated region
  $region6: #{res_forward.9} parent=0 // pred_check
    _
  $region7: #{res_forward.9} parent=0 // pred_check_branch
    %13 = sbr.rel (0) target = $region9
  $region8: #{res_forward.9} parent=0 // pred_region
    _
  $region9: #{res_forward.9} parent=0 // pred_fallthru
    _
  // Predicated region
  $region10: #{res_forward.9} parent=0 // pred_check
    _
  $region11: #{res_forward.9} parent=0 // pred_check_branch
    %15 = sbr.rel (0) target = $region13
  $region12: #{res_forward.9} parent=0 // pred_region
    _
  $region13: #{res_forward.9} parent=0 // pred_fallthru
    _
  %v16 = vld [vmem:[%s0] sm:$0xff]
  %v17 = vld [vmem:[%s0 + $0x8] sm:$0xff]
  %v18 = vld [vmem:[%s1] sm:$0x3]
  %v20 = vlaneseq
  %v21 = vshrl.u32 %v20, 7
  %v22 = vsub.s32 0, %v21
  %v23 = vrot.slane %v18, %v22
  %v24 = vlaneseq
  %v25 = vshrl.u32 %v24, 7
  %v26 = vsub.s32 1, %v25
  %v27 = vrot.slane %v18, %v26
  %v30 = vmul.f32 %v16, %v23
  %v31 = vmul.f32 %v17, %v27
  %v32 = vadd.f32 %v30, %v31
  %33 = vadd.xlane.f32.xlu0 %v32
  %v34 = vpop.xlane.xlu0 %33
  %v35 = vld [vmem:[#allocation2] sm:$0x1]
  %v37 = vlaneseq
  %v38 = vshrl.u32 %v37, 7
  %v39 = vsub.s32 0, %v38
  %v40 = vrot.slane %v35, %v39
  %v42 = vadd.f32 %v34, %v40
  %v43 = vxor.u32 %v42, 2147483648
  %v44 = vmul.f32 %v43, 1.442695
  %v45 = vpow.pop %v44
  %v46 = vadd.f32 %v45, 1.0
  %v47 = vrcp.pop %v46
  %v48 = vmul.f32 1.0, %v47
  %vm49 = vcmask 7168
  %50 = vst.msk [vmem:[%s3] sm:$0xff] %vm49, %v48
  // Predicated region
  $region14: #{res_forward.9} parent=0 // pred_check
    _
  $region15: #{res_forward.9} parent=0 // pred_check_branch
    %52 = sbr.rel (0) target = $region17
  $region16: #{res_forward.9} parent=0 // pred_region
    _
  $region17: #{res_forward.9} parent=0 // pred_fallthru
    _
  // Predicated region
  $region18: #{res_forward.9} parent=0 // pred_check
    _
  $region19: #{res_forward.9} parent=0 // pred_check_branch
    %54 = sbr.rel (0) target = $region21
  $region20: #{res_forward.9} parent=0 // pred_region
    _
  $region21: #{res_forward.9} parent=0 // pred_fallthru
    _

// kernel: res_forward.8
$region0: #{res_forward.8}
  #allocation0 [shape = 'u32[]', space=smem, size = 0x4, offset = 0x4, fixed_abs, tag = 'smem constant byte address 0x4 - core index']
  #allocation1 [shape = 'u32[144,128]{1,0:T(1,128)}', space=vmem, size = 0x12000, scoped, tag = 'internal scratch']
  %s0 = inlined_call_operand.vmem [shape: bf16[32,256], index: 0, kind: input, shape index: {}]
  %s1 = inlined_call_operand.vmem [shape: bf16[256,128], index: 1, kind: input, shape index: {}]
  %s2 = inlined_call_operand.vmem [shape: f32[1,128], index: 2, kind: input, shape index: {}]
  %s3 = inlined_call_operand.vmem [shape: f32[1,128], index: 3, kind: input, shape index: {}]
  %s4 = inlined_call_operand.vmem [shape: bf16[32,128], index: 4, kind: input, shape index: {}]
  %s5 = inlined_call_operand.vmem [shape: bf16[128,128], index: 5, kind: input, shape index: {}]
  %s6 = inlined_call_operand.vmem [shape: f32[1,128], index: 6, kind: input, shape index: {}]
  %s7 = inlined_call_operand.vmem [shape: f32[1,128], index: 7, kind: input, shape index: {}]
  %s8 = inlined_call_operand.vmem [shape: bf16[32,128], index: 8, kind: output, shape index: {}]
  %s9 = sld [smem:[#allocation0]]
  $region42: #{res_forward.8} parent=0
    _
  %s11 = ssub.s32 1, %s9
  %s12 = scalar_select 0, %s11, %s9
  // Predicated region
  $region2: #{res_forward.8} parent=0 // pred_check
    _
  $region3: #{res_forward.8} parent=0 // pred_check_branch
    %14 = sbr.rel (0) target = $region5
  $region4: #{res_forward.8} parent=0 // pred_region
    _
  $region5: #{res_forward.8} parent=0 // pred_fallthru
    _
  // Predicated region
  $region6: #{res_forward.8} parent=0 // pred_check
    _
  $region7: #{res_forward.8} parent=0 // pred_check_branch
    %16 = sbr.rel (0) target = $region9
  $region8: #{res_forward.8} parent=0 // pred_region
    _
  $region9: #{res_forward.8} parent=0 // pred_fallthru
    _
  // Predicated region
  $region10: #{res_forward.8} parent=0 // pred_check
    _
  $region11: #{res_forward.8} parent=0 // pred_check_branch
    %18 = sbr.rel (0) target = $region13
  $region12: #{res_forward.8} parent=0 // pred_region
    _
  $region13: #{res_forward.8} parent=0 // pred_fallthru
    _
  // Predicated region
  $region14: #{res_forward.8} parent=0 // pred_check
    _
  $region15: #{res_forward.8} parent=0 // pred_check_branch
    %20 = sbr.rel (0) target = $region17
  $region16: #{res_forward.8} parent=0 // pred_region
    _
  $region17: #{res_forward.8} parent=0 // pred_fallthru
    _
  // Predicated region
  $region18: #{res_forward.8} parent=0 // pred_check
    _
  $region19: #{res_forward.8} parent=0 // pred_check_branch
    %22 = sbr.rel (0) target = $region21
  $region20: #{res_forward.8} parent=0 // pred_region
    _
  $region21: #{res_forward.8} parent=0 // pred_fallthru
    _
  // Predicated region
  $region22: #{res_forward.8} parent=0 // pred_check
    _
  $region23: #{res_forward.8} parent=0 // pred_check_branch
    %24 = sbr.rel (0) target = $region25
  $region24: #{res_forward.8} parent=0 // pred_region
    _
  $region25: #{res_forward.8} parent=0 // pred_fallthru
    _
  // Predicated region
  $region26: #{res_forward.8} parent=0 // pred_check
    _
  $region27: #{res_forward.8} parent=0 // pred_check_branch
    %26 = sbr.rel (0) target = $region29
  $region28: #{res_forward.8} parent=0 // pred_region
    _
  $region29: #{res_forward.8} parent=0 // pred_fallthru
    _
  // Predicated region
  $region30: #{res_forward.8} parent=0 // pred_check
    _
  $region31: #{res_forward.8} parent=0 // pred_check_branch
    %28 = sbr.rel (0) target = $region33
  $region32: #{res_forward.8} parent=0 // pred_region
    _
  $region33: #{res_forward.8} parent=0 // pred_fallthru
    _
  %v30 = vld [vmem:[%s0] sm:$0xff]
  %v31 = vld [vmem:[%s0 + $0x8] sm:$0xff]
  %v32 = vld [vmem:[%s0 + $0x10] sm:$0xff]
  %v33 = vld [vmem:[%s0 + $0x18] sm:$0xff]
  %v34 = vld [vmem:[%s1] sm:$0xf]
  %v35 = vld [vmem:[%s1 + $0x4] sm:$0xf]
  %v36 = vld [vmem:[%s1 + $0x8] sm:$0xf]
  %v37 = vld [vmem:[%s1 + $0xc] sm:$0xf]
  %v38 = vld [vmem:[%s1 + $0x10] sm:$0xf]
  %v39 = vld [vmem:[%s1 + $0x14] sm:$0xf]
  %v40 = vld [vmem:[%s1 + $0x18] sm:$0xf]
  %v41 = vld [vmem:[%s1 + $0x1c] sm:$0xf]
  %v42 = vld [vmem:[%s1 + $0x20] sm:$0xf]
  %v43 = vld [vmem:[%s1 + $0x24] sm:$0xf]
  %v44 = vld [vmem:[%s1 + $0x28] sm:$0xf]
  %v45 = vld [vmem:[%s1 + $0x2c] sm:$0xf]
  %v46 = vld [vmem:[%s1 + $0x30] sm:$0xf]
  %v47 = vld [vmem:[%s1 + $0x34] sm:$0xf]
  %v48 = vld [vmem:[%s1 + $0x38] sm:$0xf]
  %v49 = vld [vmem:[%s1 + $0x3c] sm:$0xf]
  %v50 = vld [vmem:[%s1 + $0x40] sm:$0xf]
  %v51 = vld [vmem:[%s1 + $0x44] sm:$0xf]
  %v52 = vld [vmem:[%s1 + $0x48] sm:$0xf]
  %v53 = vld [vmem:[%s1 + $0x4c] sm:$0xf]
  %v54 = vld [vmem:[%s1 + $0x50] sm:$0xf]
  %v55 = vld [vmem:[%s1 + $0x54] sm:$0xf]
  %v56 = vld [vmem:[%s1 + $0x58] sm:$0xf]
  %v57 = vld [vmem:[%s1 + $0x5c] sm:$0xf]
  %v58 = vld [vmem:[%s1 + $0x60] sm:$0xf]
  %v59 = vld [vmem:[%s1 + $0x64] sm:$0xf]
  %v60 = vld [vmem:[%s1 + $0x68] sm:$0xf]
  %v61 = vld [vmem:[%s1 + $0x6c] sm:$0xf]
  %v62 = vld [vmem:[%s1 + $0x70] sm:$0xf]
  %v63 = vld [vmem:[%s1 + $0x74] sm:$0xf]
  %v64 = vld [vmem:[%s1 + $0x78] sm:$0xf]
  %v65 = vld [vmem:[%s1 + $0x7c] sm:$0xf]
  %v70 = vunpack.c.l.b16 %v30
  %v71 = vunpack.c.h.b16 %v30
  %v72 = vunpack.c.l.b16 %v31
  %v73 = vunpack.c.h.b16 %v31
  %v74 = vunpack.c.l.b16 %v32
  %v75 = vunpack.c.h.b16 %v32
  %v76 = vunpack.c.l.b16 %v33
  %v77 = vunpack.c.h.b16 %v33
  %v78 = vpack.c.b16 %v72, %v70
  %v79 = vpack.c.b16 %v73, %v71
  %v80 = vpack.c.b16 %v76, %v74
  %v81 = vpack.c.b16 %v77, %v75
  %v118 = vunpack.c.l.b16 %v34
  %v119 = vunpack.c.l.b16 %v35
  %v120 = vunpack.c.l.b16 %v36
  %v121 = vunpack.c.l.b16 %v37
  %v122 = vunpack.c.l.b16 %v38
  %v123 = vunpack.c.l.b16 %v39
  %v124 = vunpack.c.l.b16 %v40
  %v125 = vunpack.c.l.b16 %v41
  %v126 = vunpack.c.l.b16 %v42
  %v127 = vunpack.c.l.b16 %v43
  %v128 = vunpack.c.l.b16 %v44
  %v129 = vunpack.c.l.b16 %v45
  %v130 = vunpack.c.l.b16 %v46
  %v131 = vunpack.c.l.b16 %v47
  %v132 = vunpack.c.l.b16 %v48
  %v133 = vunpack.c.l.b16 %v49
  %v134 = vunpack.c.l.b16 %v50
  %v135 = vunpack.c.l.b16 %v51
  %v136 = vunpack.c.l.b16 %v52
  %v137 = vunpack.c.l.b16 %v53
  %v138 = vunpack.c.l.b16 %v54
  %v139 = vunpack.c.l.b16 %v55
  %v140 = vunpack.c.l.b16 %v56
  %v141 = vunpack.c.l.b16 %v57
  %v142 = vunpack.c.l.b16 %v58
  %v143 = vunpack.c.l.b16 %v59
  %v144 = vunpack.c.l.b16 %v60
  %v145 = vunpack.c.l.b16 %v61
  %v146 = vunpack.c.l.b16 %v62
  %v147 = vunpack.c.l.b16 %v63
  %v148 = vunpack.c.l.b16 %v64
  %v149 = vunpack.c.l.b16 %v65
  %v150 = vpack.c.b16 %v119, %v118
  %v151 = vpack.c.b16 %v121, %v120
  %v152 = vpack.c.b16 %v123, %v122
  %v153 = vpack.c.b16 %v125, %v124
  %v154 = vpack.c.b16 %v127, %v126
  %v155 = vpack.c.b16 %v129, %v128
  %v156 = vpack.c.b16 %v131, %v130
  %v157 = vpack.c.b16 %v133, %v132
  %v158 = vpack.c.b16 %v135, %v134
  %v159 = vpack.c.b16 %v137, %v136
  %v160 = vpack.c.b16 %v139, %v138
  %v161 = vpack.c.b16 %v141, %v140
  %v162 = vpack.c.b16 %v143, %v142
  %v163 = vpack.c.b16 %v145, %v144
  %v164 = vpack.c.b16 %v147, %v146
  %v165 = vpack.c.b16 %v149, %v148
  %182 = vmatprep.subr.bf16.mxu0 0
  %183 = vmatpush1.bf16.msra.mxu0 %v150
  %184 = vmatprep.subr.bf16.mxu0 0
  %185 = vmatpush1.bf16.msra.mxu0 %v151
  %186 = vmatprep.subr.bf16.mxu0 0
  %187 = vmatpush1.bf16.msra.mxu0 %v152
  %188 = vmatprep.subr.bf16.mxu0 0
  %189 = vmatpush1.bf16.msra.mxu0 %v153
  %190 = vmatprep.subr.bf16.mxu0 0
  %191 = vmatpush1.bf16.msra.mxu0 %v154
  %192 = vmatprep.subr.bf16.mxu0 0
  %193 = vmatpush1.bf16.msra.mxu0 %v155
  %194 = vmatprep.subr.bf16.mxu0 0
  %195 = vmatpush1.bf16.msra.mxu0 %v156
  %196 = vmatprep.subr.bf16.mxu0 0
  %197 = vmatpush1.bf16.msra.mxu0 %v157
  %198 = vmatprep.subr.bf16.mxu0 0
  %199 = vmatpush1.bf16.msra.mxu0 %v158
  %200 = vmatprep.subr.bf16.mxu0 0
  %201 = vmatpush1.bf16.msra.mxu0 %v159
  %202 = vmatprep.subr.bf16.mxu0 0
  %203 = vmatpush1.bf16.msra.mxu0 %v160
  %204 = vmatprep.subr.bf16.mxu0 0
  %205 = vmatpush1.bf16.msra.mxu0 %v161
  %206 = vmatprep.subr.bf16.mxu0 0
  %207 = vmatpush1.bf16.msra.mxu0 %v162
  %208 = vmatprep.subr.bf16.mxu0 0
  %209 = vmatpush1.bf16.msra.mxu0 %v163
  %210 = vmatprep.subr.bf16.mxu0 0
  %211 = vmatpush1.bf16.msra.mxu0 %v164
  %212 = vmatprep.subr.bf16.mxu0 0
  %213 = vmatpush1.bf16.msra.mxu0 %v165
  %214 = vmatprep.mubr.bf16.mxu0 %v79
  %215 = vmatmul.mubr.bf16.gmra.mrb[0].mxu0 %v78
  %v216 = vpop.f32.mrb[0].mxu0
  %v217 = vadd.f32 0.0, %v216
  %v218 = vpop.f32.mrb[0].mxu0
  %v219 = vpop.f32.mrb[0].mxu0
  %v220 = vadd.f32 0.0, %v219
  %v221 = vpop.f32.mrb[0].mxu0
  %222 = vmatprep.mubr.bf16.mxu0 %v81
  %223 = vmatmul.mubr.bf16.gmra.mrb[0].mxu0 %v80
  %v224 = vpop.f32.mrb[0].mxu0
  %v225 = vadd.f32 0.0, %v224
  %v226 = vpop.f32.mrb[0].mxu0
  %v227 = vpop.f32.mrb[0].mxu0
  %v228 = vadd.f32 0.0, %v227
  %v229 = vpop.f32.mrb[0].mxu0
  %230 = vdwg.mxu0
  %v231 = vld [vmem:[%s4] sm:$0xf]
  %v232 = vld [vmem:[%s4 + $0x4] sm:$0xf]
  %v233 = vld [vmem:[%s4 + $0x8] sm:$0xf]
  %v234 = vld [vmem:[%s4 + $0xc] sm:$0xf]
  %v235 = vld [vmem:[%s5] sm:$0xf]
  %v236 = vld [vmem:[%s5 + $0x4] sm:$0xf]
  %v237 = vld [vmem:[%s5 + $0x8] sm:$0xf]
  %v238 = vld [vmem:[%s5 + $0xc] sm:$0xf]
  %v239 = vld [vmem:[%s5 + $0x10] sm:$0xf]
  %v240 = vld [vmem:[%s5 + $0x14] sm:$0xf]
  %v241 = vld [vmem:[%s5 + $0x18] sm:$0xf]
  %v242 = vld [vmem:[%s5 + $0x1c] sm:$0xf]
  %v243 = vld [vmem:[%s5 + $0x20] sm:$0xf]
  %v244 = vld [vmem:[%s5 + $0x24] sm:$0xf]
  %v245 = vld [vmem:[%s5 + $0x28] sm:$0xf]
  %v246 = vld [vmem:[%s5 + $0x2c] sm:$0xf]
  %v247 = vld [vmem:[%s5 + $0x30] sm:$0xf]
  %v248 = vld [vmem:[%s5 + $0x34] sm:$0xf]
  %v249 = vld [vmem:[%s5 + $0x38] sm:$0xf]
  %v250 = vld [vmem:[%s5 + $0x3c] sm:$0xf]
  %v255 = vunpack.c.l.b16 %v231
  %v256 = vunpack.c.l.b16 %v232
  %v257 = vunpack.c.l.b16 %v233
  %v258 = vunpack.c.l.b16 %v234
  %v259 = vpack.c.b16 %v256, %v255
  %v260 = vpack.c.b16 %v258, %v257
  %v279 = vunpack.c.l.b16 %v235
  %v280 = vunpack.c.l.b16 %v236
  %v281 = vunpack.c.l.b16 %v237
  %v282 = vunpack.c.l.b16 %v238
  %v283 = vunpack.c.l.b16 %v239
  %v284 = vunpack.c.l.b16 %v240
  %v285 = vunpack.c.l.b16 %v241
  %v286 = vunpack.c.l.b16 %v242
  %v287 = vunpack.c.l.b16 %v243
  %v288 = vunpack.c.l.b16 %v244
  %v289 = vunpack.c.l.b16 %v245
  %v290 = vunpack.c.l.b16 %v246
  %v291 = vunpack.c.l.b16 %v247
  %v292 = vunpack.c.l.b16 %v248
  %v293 = vunpack.c.l.b16 %v249
  %v294 = vunpack.c.l.b16 %v250
  %v295 = vpack.c.b16 %v280, %v279
  %v296 = vpack.c.b16 %v282, %v281
  %v297 = vpack.c.b16 %v284, %v283
  %v298 = vpack.c.b16 %v286, %v285
  %v299 = vpack.c.b16 %v288, %v287
  %v300 = vpack.c.b16 %v290, %v289
  %v301 = vpack.c.b16 %v292, %v291
  %v302 = vpack.c.b16 %v294, %v293
  %311 = vmatprep.subr.bf16.mxu0 0
  %312 = vmatpush1.bf16.msra.mxu0 %v295
  %313 = vmatprep.subr.bf16.mxu0 0
  %314 = vmatpush1.bf16.msra.mxu0 %v296
  %315 = vmatprep.subr.bf16.mxu0 0
  %316 = vmatpush1.bf16.msra.mxu0 %v297
  %317 = vmatprep.subr.bf16.mxu0 0
  %318 = vmatpush1.bf16.msra.mxu0 %v298
  %319 = vmatprep.subr.bf16.mxu0 0
  %320 = vmatpush1.bf16.msra.mxu0 %v299
  %321 = vmatprep.subr.bf16.mxu0 0
  %322 = vmatpush1.bf16.msra.mxu0 %v300
  %323 = vmatprep.subr.bf16.mxu0 0
  %324 = vmatpush1.bf16.msra.mxu0 %v301
  %325 = vmatprep.subr.bf16.mxu0 0
  %326 = vmatpush1.bf16.msra.mxu0 %v302
  %327 = vmatprep.subr.bf16.mxu0 0
  %328 = vmatpush1.bf16.msra.mxu0 0
  %329 = vmatprep.subr.bf16.mxu0 0
  %330 = vmatpush1.bf16.msra.mxu0 0
  %331 = vmatprep.subr.bf16.mxu0 0
  %332 = vmatpush1.bf16.msra.mxu0 0
  %333 = vmatprep.subr.bf16.mxu0 0
  %334 = vmatpush1.bf16.msra.mxu0 0
  %335 = vmatprep.subr.bf16.mxu0 0
  %336 = vmatpush1.bf16.msra.mxu0 0
  %337 = vmatprep.subr.bf16.mxu0 0
  %338 = vmatpush1.bf16.msra.mxu0 0
  %339 = vmatprep.subr.bf16.mxu0 0
  %340 = vmatpush1.bf16.msra.mxu0 0
  %341 = vmatprep.subr.bf16.mxu0 0
  %342 = vmatpush1.bf16.msra.mxu0 0
  %343 = vmatprep.mubr.bf16.mxu0 0
  %344 = vmatmul.mubr.bf16.gmra.mrb[0].mxu0 %v259
  %v345 = vpop.f32.mrb[0].mxu0
  %v346 = vadd.f32 0.0, %v345
  %v347 = vpop.f32.mrb[0].mxu0
  %v348 = vpop.f32.mrb[0].mxu0
  %v349 = vadd.f32 0.0, %v348
  %v350 = vpop.f32.mrb[0].mxu0
  %351 = vmatprep.mubr.bf16.mxu0 0
  %352 = vmatmul.mubr.bf16.gmra.mrb[0].mxu0 %v260
  %v353 = vpop.f32.mrb[0].mxu0
  %v354 = vadd.f32 0.0, %v353
  %v355 = vpop.f32.mrb[0].mxu0
  %v356 = vpop.f32.mrb[0].mxu0
  %v357 = vadd.f32 0.0, %v356
  %v358 = vpop.f32.mrb[0].mxu0
  %359 = vdwg.mxu0
  %v360 = vld [vmem:[%s2] sm:$0x1]
  %v362 = vlaneseq
  %v363 = vshrl.u32 %v362, 7
  %v364 = vsub.s32 0, %v363
  %v365 = vrot.slane %v360, %v364
  %v367 = vmul.f32 %v217, %v365
  %v368 = vmul.f32 %v220, %v365
  %v369 = vmul.f32 %v225, %v365
  %v370 = vmul.f32 %v228, %v365
  %v371 = vld [vmem:[%s3] sm:$0x1]
  %v373 = vlaneseq
  %v374 = vshrl.u32 %v373, 7
  %v375 = vsub.s32 0, %v374
  %v376 = vrot.slane %v371, %v375
  %v378 = vadd.f32 %v367, %v376
  %v379 = vadd.f32 %v368, %v376
  %v380 = vadd.f32 %v369, %v376
  %v381 = vadd.f32 %v370, %v376
  %v382 = vld [vmem:[%s6] sm:$0x1]
  %v384 = vlaneseq
  %v385 = vshrl.u32 %v384, 7
  %v386 = vsub.s32 0, %v385
  %v387 = vrot.slane %v382, %v386
  %v389 = vmul.f32 %v346, %v387
  %v390 = vmul.f32 %v349, %v387
  %v391 = vmul.f32 %v354, %v387
  %v392 = vmul.f32 %v357, %v387
  %v393 = vadd.f32 %v378, %v389
  %v394 = vadd.f32 %v379, %v390
  %v395 = vadd.f32 %v380, %v391
  %v396 = vadd.f32 %v381, %v392
  %v397 = vld [vmem:[%s7] sm:$0x1]
  %v399 = vlaneseq
  %v400 = vshrl.u32 %v399, 7
  %v401 = vsub.s32 0, %v400
  %v402 = vrot.slane %v397, %v401
  %v404 = vadd.f32 %v393, %v402
  %v405 = vadd.f32 %v394, %v402
  %v406 = vadd.f32 %v395, %v402
  %v407 = vadd.f32 %v396, %v402
  %v408 = vmax.f32 %v404, 0.0
  %v409 = vmax.f32 %v405, 0.0
  %v410 = vmax.f32 %v406, 0.0
  %v411 = vmax.f32 %v407, 0.0
  %v412 = vpack.c.bf16 %v409, %v408
  %v413 = vpack.c.bf16 %v411, %v410
  %v416 = vunpack.c.l.b16 %v412
  %v417 = vunpack.c.h.b16 %v412
  %v418 = vunpack.c.l.b16 %v413
  %v419 = vunpack.c.h.b16 %v413
  %v420 = vpack.c.b16 %v416, %v416
  %v421 = vpack.c.b16 %v417, %v417
  %v422 = vpack.c.b16 %v418, %v418
  %v423 = vpack.c.b16 %v419, %v419
  %428 = vst [vmem:[%s8] sm:$0xf] %v420
  %429 = vst [vmem:[%s8 + $0x4] sm:$0xf] %v421
  %430 = vst [vmem:[%s8 + $0x8] sm:$0xf] %v422
  %431 = vst [vmem:[%s8 + $0xc] sm:$0xf] %v423
  // Predicated region
  $region34: #{res_forward.8} parent=0 // pred_check
    _
  $region35: #{res_forward.8} parent=0 // pred_check_branch
    %433 = sbr.rel (0) target = $region37
  $region36: #{res_forward.8} parent=0 // pred_region
    _
  $region37: #{res_forward.8} parent=0 // pred_fallthru
    _
  // Predicated region
  $region38: #{res_forward.8} parent=0 // pred_check
    _
  $region39: #{res_forward.8} parent=0 // pred_check_branch
    %435 = sbr.rel (0) target = $region41
  $region40: #{res_forward.8} parent=0 // pred_region
    _
  $region41: #{res_forward.8} parent=0 // pred_fallthru
    _

</llo_original>
